<compile_context>
chip_gen: v7x
topology: tpu7x:2x2x1
jax: 0.10.0
libtpu: 0.0.40
codegen_flags: <defaults>
</compile_context>

<pallas_src>
import functools

import jax
import jax.numpy as jnp
from jax.experimental import pallas as pl
from jax.experimental.pallas import tpu as pltpu

BACKBONE = 256
HEAD = 128
POS_L = 10
DIR_L = 4
POS_DIM = 3 + 3 * 2 * POS_L   # 63
DIR_DIM = 3 + 3 * 2 * DIR_L   # 27
ENC_LANES = 128               # lane-dense input slab: [pos_enc(63), dir_enc(27), 0...]
OUT_LANES = 128               # lane-dense output slab: [density(1), rgb(3), 0...]


def _round_up(x, m):
    return ((x + m - 1) // m) * m


def _default_tm():
    """Per-generation default row tile.

    v5e: a 512-row step is already ~3 us of MXU work (197 TF/s), so the
    ~0.35 us/step pipeline overhead is ~10%; bigger tiles only add scoped-VMEM
    pressure.  v6e/v7x: 1024 rows keeps the step overhead small while staying
    far under the 32 MiB scoped-VMEM limit (v7x has 64 MiB physical per TC).
    """
    try:
        kind = jax.devices()[0].device_kind.lower()
    except Exception:
        kind = ""
    if ("v5 lite" in kind) or ("v5e" in kind) or ("v5lite" in kind):
        return 512
    return 1024


# ---------------------------------------------------------------------------
# Trigonometric (NeRF positional) encoding -- cheap elementwise glue in XLA.
# ---------------------------------------------------------------------------
def trig_encode(x, L, include_input=True):
    # x: (N, C) -> (N, C + 2*L*C)
    freqs = (2.0 ** jnp.arange(L, dtype=jnp.float32))            # (L,)
    xb = x[:, None, :] * freqs[None, :, None]                    # (N, L, C)
    enc = jnp.concatenate([jnp.sin(xb), jnp.cos(xb)], axis=-1)   # (N, L, 2C)
    enc = enc.reshape(x.shape[0], L * 2 * x.shape[1])
    if include_input:
        enc = jnp.concatenate([x, enc], axis=-1)
    return enc


# ---------------------------------------------------------------------------
# Pallas kernel: the whole MLP for one tile of TM rows.
# ---------------------------------------------------------------------------
def spacenet_kernel(enc_ref,
                    w1_ref, w2_ref, w3_ref, w4_ref,
                    w5x_ref, w5p_ref, w6_ref, w7_ref,
                    whead_ref, wr1d_ref, wor_ref,
                    bbb_ref, bhd_ref,
                    out_ref):
    cdt = w1_ref.dtype  # compute dtype of the matmul operands (bf16 or f32)

    def mm(a, w_ref):
        return jnp.dot(a.astype(cdt), w_ref[...],
                       preferred_element_type=jnp.float32)

    relu = lambda v: jnp.maximum(v, 0.0)

    e = enc_ref[...]                                   # (TM, 128) compute dtype

    # stage1: 4 x Linear + ReLU (w1 K-padded 63 -> 128; dir/pad lanes hit zeros)
    h = relu(mm(e, w1_ref) + bbb_ref[0:1, :])
    h = relu(mm(h, w2_ref) + bbb_ref[1:2, :])
    h = relu(mm(h, w3_ref) + bbb_ref[2:3, :])
    h = relu(mm(h, w4_ref) + bbb_ref[3:4, :])

    # stage2: Linear(cat[h, pos_enc]) + ReLU, Linear + ReLU, Linear
    # (the concat is a split matmul on the zero-padded K=128 encoding slab)
    x = relu(mm(h, w5x_ref) + mm(e, w5p_ref) + bbb_ref[4:5, :])
    x = relu(mm(x, w6_ref) + bbb_ref[5:6, :])
    x = mm(x, w7_ref) + bbb_ref[6:7, :]

    xr = relu(x)

    # Fused head matmul (shared xr LHS): one full 256-wide MXU pass.
    #   cols   0..127 = xr @ wr1x  (rgb hidden pre-activation)
    #   cols 128..255 = xr @ wox   (col 128 = density partial, rest zero)
    xh = mm(xr, whead_ref)                             # (TM, 256) f32

    # rgb head: torch applies ReLU to cat([x, dirs_enc]) first -> rectify e too
    # (pos lanes of relu(e) hit zero rows of wr1d, so this is exact).
    r = relu(xh[:, :HEAD] + mm(relu(e), wr1d_ref) + bhd_ref[0:1, :])

    # Lane-dense output slab: lane 0 = density, lanes 1..3 = rgb, rest 0.
    out = xh[:, HEAD:] + mm(r, wor_ref) + bhd_ref[1:2, :]
    out_ref[...] = out.astype(out_ref.dtype)


# ---------------------------------------------------------------------------
# Parameter construction (deterministic, synthetic).
# ---------------------------------------------------------------------------
def init_params(key):
    def linear(k, fan_in, fan_out):
        kw, kb = jax.random.split(k)
        scale = 1.0 / jnp.sqrt(fan_in)
        w = jax.random.uniform(kw, (fan_in, fan_out), jnp.float32, -scale, scale)
        b = jax.random.uniform(kb, (1, fan_out), jnp.float32, -scale, scale)
        return w, b

    keys = jax.random.split(key, 11)
    p = {}
    p["w1"], p["b1"] = linear(keys[0], POS_DIM, BACKBONE)
    p["w2"], p["b2"] = linear(keys[1], BACKBONE, BACKBONE)
    p["w3"], p["b3"] = linear(keys[2], BACKBONE, BACKBONE)
    p["w4"], p["b4"] = linear(keys[3], BACKBONE, BACKBONE)
    w5, p["b5"] = linear(keys[4], BACKBONE + POS_DIM, BACKBONE)
    p["w5x"], p["w5p"] = w5[:BACKBONE], w5[BACKBONE:]
    p["w6"], p["b6"] = linear(keys[5], BACKBONE, BACKBONE)
    p["w7"], p["b7"] = linear(keys[6], BACKBONE, BACKBONE)
    p["wd"], p["bd"] = linear(keys[7], BACKBONE, 1)
    wr1, p["br1"] = linear(keys[8], BACKBONE + DIR_DIM, HEAD)
    p["wr1x"], p["wr1d"] = wr1[:BACKBONE], wr1[BACKBONE:]
    p["wr2"], p["br2"] = linear(keys[9], HEAD, 3)
    return p


# ---------------------------------------------------------------------------
# Pack parameters into lane-aligned kernel operands.
# ---------------------------------------------------------------------------
def pack_params(params, compute_dtype):
    f32 = jnp.float32

    def pad_rows(w, k_pad, row_off=0):
        out = jnp.zeros((k_pad, w.shape[1]), f32)
        return out.at[row_off:row_off + w.shape[0], :].set(w)

    def pad_cols(w, n_pad, col_off=0):
        out = jnp.zeros((w.shape[0], n_pad), f32)
        return out.at[:, col_off:col_off + w.shape[1]].set(w)

    w1p   = pad_rows(params["w1"], ENC_LANES)                       # (128,256)
    w5p_p = pad_rows(params["w5p"], ENC_LANES)                      # (128,256)
    wr1dp = pad_rows(params["wr1d"], ENC_LANES, row_off=POS_DIM)    # dir rows 63..89
    wox   = pad_cols(params["wd"], OUT_LANES, col_off=0)            # density -> col 0
    # Fused head weight: cols 0..127 = wr1x (rgb hidden), col 128 = wd (density).
    whead = jnp.concatenate([params["wr1x"], wox], axis=1)          # (256,256)
    wor   = pad_cols(params["wr2"], OUT_LANES, col_off=1)           # rgb -> cols 1..3

    weights = [w1p, params["w2"], params["w3"], params["w4"],
               params["w5x"], w5p_p, params["w6"], params["w7"],
               whead, wr1dp, wor]
    weights = [w.astype(compute_dtype) for w in weights]

    # Backbone biases stacked into one (8,256) array; head biases into (8,128).
    b_bb = jnp.zeros((8, BACKBONE), f32)
    for r, name in enumerate(["b1", "b2", "b3", "b4", "b5", "b6", "b7"]):
        b_bb = b_bb.at[r, :].set(params[name][0])
    b_out = (jnp.zeros((OUT_LANES,), f32)
             .at[0].set(params["bd"][0, 0])
             .at[1:4].set(params["br2"][0]))
    b_hd = jnp.zeros((8, OUT_LANES), f32)
    b_hd = b_hd.at[0, :].set(params["br1"][0])
    b_hd = b_hd.at[1, :].set(b_out)
    return weights, [b_bb, b_hd]


# ---------------------------------------------------------------------------
# Wrapper: encoding + lane-dense packing + pallas_call + unpack.
# ---------------------------------------------------------------------------
@functools.partial(jax.jit, static_argnames=("tm", "compute_dtype"))
def _spacenet_forward_impl(pos, rays, params, tm, compute_dtype):
    # pos: (B, Lseq, 3), rays: (B, 6)
    B, Lseq, _ = pos.shape
    dirs = rays[:, 0:3]
    dirs = dirs / jnp.linalg.norm(dirs, axis=-1, keepdims=True)
    dirs = jnp.repeat(dirs[:, None, :], Lseq, axis=1).reshape(-1, 3)
    pos_flat = pos.reshape(-1, 3)

    pos_enc = trig_encode(pos_flat, POS_L)   # (N, 63)
    dir_enc = trig_encode(dirs, DIR_L)       # (N, 27)

    n = pos_enc.shape[0]
    # One lane-dense (N,128) input slab: [pos_enc | dir_enc | zeros].
    pad_lanes = ENC_LANES - (POS_DIM + DIR_DIM)
    enc = jnp.concatenate(
        [pos_enc, dir_enc, jnp.zeros((n, pad_lanes), jnp.float32)], axis=-1)

    # Row tile: large enough to amortize the ~0.35 us/grid-step pipeline
    # overhead, capped (a) to round_up(n,16) for tiny inputs and (b) so the
    # 1-D grid has >= 2 steps and the "parallel" axis can shard across both
    # v7x TensorCores.
    tm = max(16, min(tm, _round_up(pl.cdiv(n, 2), 16)))
    n_pad = _round_up(n, tm)
    if n_pad != n:
        enc = jnp.pad(enc, ((0, n_pad - n), (0, 0)))
    enc = enc.astype(compute_dtype)

    weights, biases = pack_params(params, compute_dtype)

    row_in = pl.BlockSpec((tm, ENC_LANES), lambda i: (i, 0))
    row_out = pl.BlockSpec((tm, OUT_LANES), lambda i: (i, 0))
    full = lambda a: pl.BlockSpec(a.shape, lambda i: (0, 0))   # resident weights

    in_specs = [row_in] + [full(w) for w in weights] + [full(b) for b in biases]

    out = pl.pallas_call(
        spacenet_kernel,
        out_shape=jax.ShapeDtypeStruct((n_pad, OUT_LANES), compute_dtype),
        grid_spec=pltpu.PrefetchScalarGridSpec(
            num_scalar_prefetch=0,
            grid=(n_pad // tm,),
            in_specs=in_specs,
            out_specs=row_out,
        ),
        compiler_params=pltpu.CompilerParams(
            dimension_semantics=("parallel",),
            vmem_limit_bytes=32 * 1024 * 1024),
    )(enc, *weights, *biases)

    density = out[:n, 0:1].astype(jnp.float32).reshape(B, Lseq, 1)
    rgb = out[:n, 1:4].astype(jnp.float32).reshape(B, Lseq, 3)
    return rgb, density


def spacenet_forward(pos, rays, params, tm=None, compute_dtype=jnp.bfloat16):
    if tm is None:
        tm = _default_tm()
    return _spacenet_forward_impl(pos, rays, params, tm=tm,
                                  compute_dtype=compute_dtype)


# ---------------------------------------------------------------------------
# Pure-JAX reference. compute_dtype=bf16 mirrors the kernel's operand rounding
# (for a tight check); f32 gives the original-module semantics.
# ---------------------------------------------------------------------------
def spacenet_reference(pos, rays, params, compute_dtype=jnp.float32):
    B, Lseq, _ = pos.shape
    dirs = rays[:, 0:3]
    dirs = dirs / jnp.linalg.norm(dirs, axis=-1, keepdims=True)
    dirs = jnp.repeat(dirs[:, None, :], Lseq, axis=1).reshape(-1, 3)
    p = trig_encode(pos.reshape(-1, 3), POS_L)
    d = trig_encode(dirs, DIR_L)

    relu = lambda v: jnp.maximum(v, 0.0)
    mm = lambda a, w: jnp.dot(a.astype(compute_dtype), w.astype(compute_dtype),
                              preferred_element_type=jnp.float32)

    h = relu(mm(p, params["w1"]) + params["b1"])
    h = relu(mm(h, params["w2"]) + params["b2"])
    h = relu(mm(h, params["w3"]) + params["b3"])
    h = relu(mm(h, params["w4"]) + params["b4"])
    x = relu(mm(h, params["w5x"]) + mm(p, params["w5p"]) + params["b5"])
    x = relu(mm(x, params["w6"]) + params["b6"])
    x = mm(x, params["w7"]) + params["b7"]
    xr = relu(x)
    density = mm(xr, params["wd"]) + params["bd"]
    # torch rgb_net: ReLU(cat([x, dirs_enc])) -> Linear -> ReLU -> Linear
    r = relu(mm(xr, params["wr1x"]) + mm(relu(d), params["wr1d"]) + params["br1"])
    rgb = mm(r, params["wr2"]) + params["br2"]
    return rgb.reshape(B, Lseq, 3), density.reshape(B, Lseq, 1)


if __name__ == "__main__":
    key = jax.random.PRNGKey(0)
    k_params, k_pos, k_rays = jax.random.split(key, 3)

    B, Lseq = 2, 8                       # N = 16 samples
    params = init_params(k_params)
    pos = jax.random.normal(k_pos, (B, Lseq, 3), jnp.float32)
    rays = jax.random.normal(k_rays, (B, 6), jnp.float32)

    rgb, density = spacenet_forward(pos, rays, params)
    jax.block_until_ready((rgb, density))

    # Tight check vs a reference that mirrors the kernel's bf16 operand rounding.
    rgb_m, den_m = spacenet_reference(pos, rays, params, compute_dtype=jnp.bfloat16)
    # Looser sanity check vs the full-f32 module semantics.
    rgb_f, den_f = spacenet_reference(pos, rays, params, compute_dtype=jnp.float32)

    assert rgb.shape == (B, Lseq, 3) and density.shape == (B, Lseq, 1)
    assert jnp.allclose(rgb, rgb_m, atol=2e-2, rtol=2e-2)
    assert jnp.allclose(density, den_m, atol=2e-2, rtol=2e-2)
    assert jnp.allclose(rgb, rgb_f, atol=1.5e-1, rtol=1.5e-1)
    assert jnp.allclose(density, den_f, atol=1.5e-1, rtol=1.5e-1)

    print("KERNEL_OK")
</pallas_src>

<mosaic_0001>
module attributes {stable_mosaic.version = 11 : i64} {
  func.func @spacenet_kernel(%arg0: i32, %arg1: memref<16x128xbf16, #tpu.memory_space<vmem>>, %arg2: memref<128x256xbf16, #tpu.memory_space<vmem>>, %arg3: memref<256x256xbf16, #tpu.memory_space<vmem>>, %arg4: memref<256x256xbf16, #tpu.memory_space<vmem>>, %arg5: memref<256x256xbf16, #tpu.memory_space<vmem>>, %arg6: memref<256x256xbf16, #tpu.memory_space<vmem>>, %arg7: memref<128x256xbf16, #tpu.memory_space<vmem>>, %arg8: memref<256x256xbf16, #tpu.memory_space<vmem>>, %arg9: memref<256x256xbf16, #tpu.memory_space<vmem>>, %arg10: memref<256x256xbf16, #tpu.memory_space<vmem>>, %arg11: memref<128x128xbf16, #tpu.memory_space<vmem>>, %arg12: memref<128x128xbf16, #tpu.memory_space<vmem>>, %arg13: memref<8x256xf32, #tpu.memory_space<vmem>>, %arg14: memref<8x128xf32, #tpu.memory_space<vmem>>, %arg15: memref<16x128xbf16, #tpu.memory_space<vmem>>) attributes {dimension_semantics = [#tpu.dimension_semantics<parallel>], iteration_bounds = array<i64: 1>, scalar_prefetch = 0 : i64, scratch_operands = 0 : i64, tpu.core_type = #tpu.core_type<tc>, window_params = [{transform_indices = @transform_0, window_bounds = array<i64: 16, 128>}, {pipeline_mode = #tpu.pipeline_mode<synchronous>, transform_indices = @transform_1, window_bounds = array<i64: 128, 256>}, {pipeline_mode = #tpu.pipeline_mode<synchronous>, transform_indices = @transform_2, window_bounds = array<i64: 256, 256>}, {pipeline_mode = #tpu.pipeline_mode<synchronous>, transform_indices = @transform_3, window_bounds = array<i64: 256, 256>}, {pipeline_mode = #tpu.pipeline_mode<synchronous>, transform_indices = @transform_4, window_bounds = array<i64: 256, 256>}, {pipeline_mode = #tpu.pipeline_mode<synchronous>, transform_indices = @transform_5, window_bounds = array<i64: 256, 256>}, {pipeline_mode = #tpu.pipeline_mode<synchronous>, transform_indices = @transform_6, window_bounds = array<i64: 128, 256>}, {pipeline_mode = #tpu.pipeline_mode<synchronous>, transform_indices = @transform_7, window_bounds = array<i64: 256, 256>}, {pipeline_mode = #tpu.pipeline_mode<synchronous>, transform_indices = @transform_8, window_bounds = array<i64: 256, 256>}, {pipeline_mode = #tpu.pipeline_mode<synchronous>, transform_indices = @transform_9, window_bounds = array<i64: 256, 256>}, {pipeline_mode = #tpu.pipeline_mode<synchronous>, transform_indices = @transform_10, window_bounds = array<i64: 128, 128>}, {pipeline_mode = #tpu.pipeline_mode<synchronous>, transform_indices = @transform_11, window_bounds = array<i64: 128, 128>}, {pipeline_mode = #tpu.pipeline_mode<synchronous>, transform_indices = @transform_12, window_bounds = array<i64: 8, 256>}, {pipeline_mode = #tpu.pipeline_mode<synchronous>, transform_indices = @transform_13, window_bounds = array<i64: 8, 128>}, {transform_indices = @transform_14, window_bounds = array<i64: 16, 128>}]} {
    %c0 = arith.constant 0 : index
    %c0_0 = arith.constant 0 : index
    %0 = vector.load %arg1[%c0, %c0_0] : memref<16x128xbf16, #tpu.memory_space<vmem>>, vector<16x128xbf16>
    %c0_1 = arith.constant 0 : index
    %c0_2 = arith.constant 0 : index
    %1 = vector.load %arg2[%c0_1, %c0_2] : memref<128x256xbf16, #tpu.memory_space<vmem>>, vector<128x256xbf16>
    %cst = arith.constant dense<0.000000e+00> : vector<16x256xf32>
    %2 = tpu.matmul %0, %1, %cst {dimension_numbers = #tpu.dot_dimension_numbers<[1], [0], [0], [1], [0, 0, 1, 1], [], []>} : vector<16x128xbf16>, vector<128x256xbf16>, vector<16x256xf32> -> vector<16x256xf32>
    %c0_3 = arith.constant 0 : index
    %c0_4 = arith.constant 0 : index
    %3 = vector.load %arg13[%c0_3, %c0_4] : memref<8x256xf32, #tpu.memory_space<vmem>>, vector<1x256xf32>
    %4 = vector.broadcast %3 : vector<1x256xf32> to vector<16x256xf32>
    %5 = arith.addf %2, %4 : vector<16x256xf32>
    %cst_5 = arith.constant 0.000000e+00 : f32
    %6 = vector.broadcast %cst_5 : f32 to vector<16x256xf32>
    %7 = arith.maximumf %5, %6 : vector<16x256xf32>
    %8 = arith.truncf %7 : vector<16x256xf32> to vector<16x256xbf16>
    %c0_6 = arith.constant 0 : index
    %c0_7 = arith.constant 0 : index
    %9 = vector.load %arg3[%c0_6, %c0_7] : memref<256x256xbf16, #tpu.memory_space<vmem>>, vector<256x256xbf16>
    %cst_8 = arith.constant dense<0.000000e+00> : vector<16x256xf32>
    %10 = tpu.matmul %8, %9, %cst_8 {dimension_numbers = #tpu.dot_dimension_numbers<[1], [0], [0], [1], [0, 0, 1, 1], [], []>} : vector<16x256xbf16>, vector<256x256xbf16>, vector<16x256xf32> -> vector<16x256xf32>
    %c1 = arith.constant 1 : index
    %c0_9 = arith.constant 0 : index
    %11 = vector.load %arg13[%c1, %c0_9] : memref<8x256xf32, #tpu.memory_space<vmem>>, vector<1x256xf32>
    %12 = vector.broadcast %11 : vector<1x256xf32> to vector<16x256xf32>
    %13 = arith.addf %10, %12 : vector<16x256xf32>
    %cst_10 = arith.constant 0.000000e+00 : f32
    %14 = vector.broadcast %cst_10 : f32 to vector<16x256xf32>
    %15 = arith.maximumf %13, %14 : vector<16x256xf32>
    %16 = arith.truncf %15 : vector<16x256xf32> to vector<16x256xbf16>
    %c0_11 = arith.constant 0 : index
    %c0_12 = arith.constant 0 : index
    %17 = vector.load %arg4[%c0_11, %c0_12] : memref<256x256xbf16, #tpu.memory_space<vmem>>, vector<256x256xbf16>
    %cst_13 = arith.constant dense<0.000000e+00> : vector<16x256xf32>
    %18 = tpu.matmul %16, %17, %cst_13 {dimension_numbers = #tpu.dot_dimension_numbers<[1], [0], [0], [1], [0, 0, 1, 1], [], []>} : vector<16x256xbf16>, vector<256x256xbf16>, vector<16x256xf32> -> vector<16x256xf32>
    %c2 = arith.constant 2 : index
    %c0_14 = arith.constant 0 : index
    %19 = vector.load %arg13[%c2, %c0_14] : memref<8x256xf32, #tpu.memory_space<vmem>>, vector<1x256xf32>
    %20 = vector.broadcast %19 : vector<1x256xf32> to vector<16x256xf32>
    %21 = arith.addf %18, %20 : vector<16x256xf32>
    %cst_15 = arith.constant 0.000000e+00 : f32
    %22 = vector.broadcast %cst_15 : f32 to vector<16x256xf32>
    %23 = arith.maximumf %21, %22 : vector<16x256xf32>
    %24 = arith.truncf %23 : vector<16x256xf32> to vector<16x256xbf16>
    %c0_16 = arith.constant 0 : index
    %c0_17 = arith.constant 0 : index
    %25 = vector.load %arg5[%c0_16, %c0_17] : memref<256x256xbf16, #tpu.memory_space<vmem>>, vector<256x256xbf16>
    %cst_18 = arith.constant dense<0.000000e+00> : vector<16x256xf32>
    %26 = tpu.matmul %24, %25, %cst_18 {dimension_numbers = #tpu.dot_dimension_numbers<[1], [0], [0], [1], [0, 0, 1, 1], [], []>} : vector<16x256xbf16>, vector<256x256xbf16>, vector<16x256xf32> -> vector<16x256xf32>
    %c3 = arith.constant 3 : index
    %c0_19 = arith.constant 0 : index
    %27 = vector.load %arg13[%c3, %c0_19] : memref<8x256xf32, #tpu.memory_space<vmem>>, vector<1x256xf32>
    %28 = vector.broadcast %27 : vector<1x256xf32> to vector<16x256xf32>
    %29 = arith.addf %26, %28 : vector<16x256xf32>
    %cst_20 = arith.constant 0.000000e+00 : f32
    %30 = vector.broadcast %cst_20 : f32 to vector<16x256xf32>
    %31 = arith.maximumf %29, %30 : vector<16x256xf32>
    %32 = arith.truncf %31 : vector<16x256xf32> to vector<16x256xbf16>
    %c0_21 = arith.constant 0 : index
    %c0_22 = arith.constant 0 : index
    %33 = vector.load %arg6[%c0_21, %c0_22] : memref<256x256xbf16, #tpu.memory_space<vmem>>, vector<256x256xbf16>
    %cst_23 = arith.constant dense<0.000000e+00> : vector<16x256xf32>
    %34 = tpu.matmul %32, %33, %cst_23 {dimension_numbers = #tpu.dot_dimension_numbers<[1], [0], [0], [1], [0, 0, 1, 1], [], []>} : vector<16x256xbf16>, vector<256x256xbf16>, vector<16x256xf32> -> vector<16x256xf32>
    %c0_24 = arith.constant 0 : index
    %c0_25 = arith.constant 0 : index
    %35 = vector.load %arg7[%c0_24, %c0_25] : memref<128x256xbf16, #tpu.memory_space<vmem>>, vector<128x256xbf16>
    %cst_26 = arith.constant dense<0.000000e+00> : vector<16x256xf32>
    %36 = tpu.matmul %0, %35, %cst_26 {dimension_numbers = #tpu.dot_dimension_numbers<[1], [0], [0], [1], [0, 0, 1, 1], [], []>} : vector<16x128xbf16>, vector<128x256xbf16>, vector<16x256xf32> -> vector<16x256xf32>
    %37 = arith.addf %34, %36 : vector<16x256xf32>
    %c4 = arith.constant 4 : index
    %c0_27 = arith.constant 0 : index
    %38 = vector.load %arg13[%c4, %c0_27] : memref<8x256xf32, #tpu.memory_space<vmem>>, vector<1x256xf32>
    %39 = vector.broadcast %38 : vector<1x256xf32> to vector<16x256xf32>
    %40 = arith.addf %37, %39 : vector<16x256xf32>
    %cst_28 = arith.constant 0.000000e+00 : f32
    %41 = vector.broadcast %cst_28 : f32 to vector<16x256xf32>
    %42 = arith.maximumf %40, %41 : vector<16x256xf32>
    %43 = arith.truncf %42 : vector<16x256xf32> to vector<16x256xbf16>
    %c0_29 = arith.constant 0 : index
    %c0_30 = arith.constant 0 : index
    %44 = vector.load %arg8[%c0_29, %c0_30] : memref<256x256xbf16, #tpu.memory_space<vmem>>, vector<256x256xbf16>
    %cst_31 = arith.constant dense<0.000000e+00> : vector<16x256xf32>
    %45 = tpu.matmul %43, %44, %cst_31 {dimension_numbers = #tpu.dot_dimension_numbers<[1], [0], [0], [1], [0, 0, 1, 1], [], []>} : vector<16x256xbf16>, vector<256x256xbf16>, vector<16x256xf32> -> vector<16x256xf32>
    %c5 = arith.constant 5 : index
    %c0_32 = arith.constant 0 : index
    %46 = vector.load %arg13[%c5, %c0_32] : memref<8x256xf32, #tpu.memory_space<vmem>>, vector<1x256xf32>
    %47 = vector.broadcast %46 : vector<1x256xf32> to vector<16x256xf32>
    %48 = arith.addf %45, %47 : vector<16x256xf32>
    %cst_33 = arith.constant 0.000000e+00 : f32
    %49 = vector.broadcast %cst_33 : f32 to vector<16x256xf32>
    %50 = arith.maximumf %48, %49 : vector<16x256xf32>
    %51 = arith.truncf %50 : vector<16x256xf32> to vector<16x256xbf16>
    %c0_34 = arith.constant 0 : index
    %c0_35 = arith.constant 0 : index
    %52 = vector.load %arg9[%c0_34, %c0_35] : memref<256x256xbf16, #tpu.memory_space<vmem>>, vector<256x256xbf16>
    %cst_36 = arith.constant dense<0.000000e+00> : vector<16x256xf32>
    %53 = tpu.matmul %51, %52, %cst_36 {dimension_numbers = #tpu.dot_dimension_numbers<[1], [0], [0], [1], [0, 0, 1, 1], [], []>} : vector<16x256xbf16>, vector<256x256xbf16>, vector<16x256xf32> -> vector<16x256xf32>
    %c6 = arith.constant 6 : index
    %c0_37 = arith.constant 0 : index
    %54 = vector.load %arg13[%c6, %c0_37] : memref<8x256xf32, #tpu.memory_space<vmem>>, vector<1x256xf32>
    %55 = vector.broadcast %54 : vector<1x256xf32> to vector<16x256xf32>
    %56 = arith.addf %53, %55 : vector<16x256xf32>
    %cst_38 = arith.constant 0.000000e+00 : f32
    %57 = vector.broadcast %cst_38 : f32 to vector<16x256xf32>
    %58 = arith.maximumf %56, %57 : vector<16x256xf32>
    %59 = arith.truncf %58 : vector<16x256xf32> to vector<16x256xbf16>
    %c0_39 = arith.constant 0 : index
    %c0_40 = arith.constant 0 : index
    %60 = vector.load %arg10[%c0_39, %c0_40] : memref<256x256xbf16, #tpu.memory_space<vmem>>, vector<256x256xbf16>
    %cst_41 = arith.constant dense<0.000000e+00> : vector<16x256xf32>
    %61 = tpu.matmul %59, %60, %cst_41 {dimension_numbers = #tpu.dot_dimension_numbers<[1], [0], [0], [1], [0, 0, 1, 1], [], []>} : vector<16x256xbf16>, vector<256x256xbf16>, vector<16x256xf32> -> vector<16x256xf32>
    %62 = vector.extract_strided_slice %61 {offsets = [0, 0], sizes = [16, 128], strides = [1, 1]} : vector<16x256xf32> to vector<16x128xf32>
    %cst_42 = arith.constant 0.000000e+00 : bf16
    %63 = vector.broadcast %cst_42 : bf16 to vector<16x128xbf16>
    %64 = arith.maximumf %0, %63 : vector<16x128xbf16>
    %c0_43 = arith.constant 0 : index
    %c0_44 = arith.constant 0 : index
    %65 = vector.load %arg11[%c0_43, %c0_44] : memref<128x128xbf16, #tpu.memory_space<vmem>>, vector<128x128xbf16>
    %cst_45 = arith.constant dense<0.000000e+00> : vector<16x128xf32>
    %66 = tpu.matmul %64, %65, %cst_45 {dimension_numbers = #tpu.dot_dimension_numbers<[1], [0], [0], [1], [0, 0, 1, 1], [], []>} : vector<16x128xbf16>, vector<128x128xbf16>, vector<16x128xf32> -> vector<16x128xf32>
    %67 = arith.addf %62, %66 : vector<16x128xf32>
    %c0_46 = arith.constant 0 : index
    %c0_47 = arith.constant 0 : index
    %68 = vector.load %arg14[%c0_46, %c0_47] : memref<8x128xf32, #tpu.memory_space<vmem>>, vector<1x128xf32>
    %69 = vector.broadcast %68 : vector<1x128xf32> to vector<16x128xf32>
    %70 = arith.addf %67, %69 : vector<16x128xf32>
    %cst_48 = arith.constant 0.000000e+00 : f32
    %71 = vector.broadcast %cst_48 : f32 to vector<16x128xf32>
    %72 = arith.maximumf %70, %71 : vector<16x128xf32>
    %73 = vector.extract_strided_slice %61 {offsets = [0, 128], sizes = [16, 128], strides = [1, 1]} : vector<16x256xf32> to vector<16x128xf32>
    %74 = arith.truncf %72 : vector<16x128xf32> to vector<16x128xbf16>
    %c0_49 = arith.constant 0 : index
    %c0_50 = arith.constant 0 : index
    %75 = vector.load %arg12[%c0_49, %c0_50] : memref<128x128xbf16, #tpu.memory_space<vmem>>, vector<128x128xbf16>
    %cst_51 = arith.constant dense<0.000000e+00> : vector<16x128xf32>
    %76 = tpu.matmul %74, %75, %cst_51 {dimension_numbers = #tpu.dot_dimension_numbers<[1], [0], [0], [1], [0, 0, 1, 1], [], []>} : vector<16x128xbf16>, vector<128x128xbf16>, vector<16x128xf32> -> vector<16x128xf32>
    %77 = arith.addf %73, %76 : vector<16x128xf32>
    %c1_52 = arith.constant 1 : index
    %c0_53 = arith.constant 0 : index
    %78 = vector.load %arg14[%c1_52, %c0_53] : memref<8x128xf32, #tpu.memory_space<vmem>>, vector<1x128xf32>
    %79 = vector.broadcast %78 : vector<1x128xf32> to vector<16x128xf32>
    %80 = arith.addf %77, %79 : vector<16x128xf32>
    %81 = arith.truncf %80 : vector<16x128xf32> to vector<16x128xbf16>
    %c0_54 = arith.constant 0 : index
    %c0_55 = arith.constant 0 : index
    %82 = vector.load %arg15[%c0_54, %c0_55] : memref<16x128xbf16, #tpu.memory_space<vmem>>, vector<16x128xbf16>
    tpu.vector_store %arg15[%c0_54, %c0_55], %81 {strides = array<i32>} : memref<16x128xbf16, #tpu.memory_space<vmem>>, vector<16x128xbf16>,
    return
  }
  func.func @transform_0(%arg0: i32) -> (i32, i32) {
    %c0_i32 = arith.constant 0 : i32
    %c0_i32_0 = arith.constant 0 : i32
    return %arg0, %c0_i32 : i32, i32
  }
  func.func @transform_1(%arg0: i32) -> (i32, i32) {
    %c0_i32 = arith.constant 0 : i32
    %c0_i32_0 = arith.constant 0 : i32
    %c0_i32_1 = arith.constant 0 : i32
    return %c0_i32, %c0_i32_0 : i32, i32
  }
  func.func @transform_2(%arg0: i32) -> (i32, i32) {
    %c0_i32 = arith.constant 0 : i32
    %c0_i32_0 = arith.constant 0 : i32
    %c0_i32_1 = arith.constant 0 : i32
    return %c0_i32, %c0_i32_0 : i32, i32
  }
  func.func @transform_3(%arg0: i32) -> (i32, i32) {
    %c0_i32 = arith.constant 0 : i32
    %c0_i32_0 = arith.constant 0 : i32
    %c0_i32_1 = arith.constant 0 : i32
    return %c0_i32, %c0_i32_0 : i32, i32
  }
  func.func @transform_4(%arg0: i32) -> (i32, i32) {
    %c0_i32 = arith.constant 0 : i32
    %c0_i32_0 = arith.constant 0 : i32
    %c0_i32_1 = arith.constant 0 : i32
    return %c0_i32, %c0_i32_0 : i32, i32
  }
  func.func @transform_5(%arg0: i32) -> (i32, i32) {
    %c0_i32 = arith.constant 0 : i32
    %c0_i32_0 = arith.constant 0 : i32
    %c0_i32_1 = arith.constant 0 : i32
    return %c0_i32, %c0_i32_0 : i32, i32
  }
  func.func @transform_6(%arg0: i32) -> (i32, i32) {
    %c0_i32 = arith.constant 0 : i32
    %c0_i32_0 = arith.constant 0 : i32
    %c0_i32_1 = arith.constant 0 : i32
    return %c0_i32, %c0_i32_0 : i32, i32
  }
  func.func @transform_7(%arg0: i32) -> (i32, i32) {
    %c0_i32 = arith.constant 0 : i32
    %c0_i32_0 = arith.constant 0 : i32
    %c0_i32_1 = arith.constant 0 : i32
    return %c0_i32, %c0_i32_0 : i32, i32
  }
  func.func @transform_8(%arg0: i32) -> (i32, i32) {
    %c0_i32 = arith.constant 0 : i32
    %c0_i32_0 = arith.constant 0 : i32
    %c0_i32_1 = arith.constant 0 : i32
    return %c0_i32, %c0_i32_0 : i32, i32
  }
  func.func @transform_9(%arg0: i32) -> (i32, i32) {
    %c0_i32 = arith.constant 0 : i32
    %c0_i32_0 = arith.constant 0 : i32
    %c0_i32_1 = arith.constant 0 : i32
    return %c0_i32, %c0_i32_0 : i32, i32
  }
  func.func @transform_10(%arg0: i32) -> (i32, i32) {
    %c0_i32 = arith.constant 0 : i32
    %c0_i32_0 = arith.constant 0 : i32
    %c0_i32_1 = arith.constant 0 : i32
    return %c0_i32, %c0_i32_0 : i32, i32
  }
  func.func @transform_11(%arg0: i32) -> (i32, i32) {
    %c0_i32 = arith.constant 0 : i32
    %c0_i32_0 = arith.constant 0 : i32
    %c0_i32_1 = arith.constant 0 : i32
    return %c0_i32, %c0_i32_0 : i32, i32
  }
  func.func @transform_12(%arg0: i32) -> (i32, i32) {
    %c0_i32 = arith.constant 0 : i32
    %c0_i32_0 = arith.constant 0 : i32
    %c0_i32_1 = arith.constant 0 : i32
    return %c0_i32, %c0_i32_0 : i32, i32
  }
  func.func @transform_13(%arg0: i32) -> (i32, i32) {
    %c0_i32 = arith.constant 0 : i32
    %c0_i32_0 = arith.constant 0 : i32
    %c0_i32_1 = arith.constant 0 : i32
    return %c0_i32, %c0_i32_0 : i32, i32
  }
  func.func @transform_14(%arg0: i32) -> (i32, i32) {
    %c0_i32 = arith.constant 0 : i32
    %c0_i32_0 = arith.constant 0 : i32
    return %arg0, %c0_i32 : i32, i32
  }
}

</mosaic_0001>

<llo_original>
// kernel: _spacenet_forward_impl.1
$region0: #{_spacenet_forward_impl.1}
  #allocation0 [shape = 'u32[]', space=smem, size = 0x4, offset = 0x4, fixed_abs, tag = 'smem constant byte address 0x4 - core index']
  #allocation1 [shape = 'u32[144,128]{1,0:T(1,128)}', space=vmem, size = 0x12000, scoped, tag = 'internal scratch']
  %s0 = inlined_call_operand.vmem [shape: bf16[16,128], index: 0, kind: input, shape index: {}]
  %s1 = inlined_call_operand.vmem [shape: bf16[128,256], index: 1, kind: input, shape index: {}]
  %s2 = inlined_call_operand.vmem [shape: bf16[256,256], index: 2, kind: input, shape index: {}]
  %s3 = inlined_call_operand.vmem [shape: bf16[256,256], index: 3, kind: input, shape index: {}]
  %s4 = inlined_call_operand.vmem [shape: bf16[256,256], index: 4, kind: input, shape index: {}]
  %s5 = inlined_call_operand.vmem [shape: bf16[256,256], index: 5, kind: input, shape index: {}]
  %s6 = inlined_call_operand.vmem [shape: bf16[128,256], index: 6, kind: input, shape index: {}]
  %s7 = inlined_call_operand.vmem [shape: bf16[256,256], index: 7, kind: input, shape index: {}]
  %s8 = inlined_call_operand.vmem [shape: bf16[256,256], index: 8, kind: input, shape index: {}]
  %s9 = inlined_call_operand.vmem [shape: bf16[256,256], index: 9, kind: input, shape index: {}]
  %s10 = inlined_call_operand.vmem [shape: bf16[128,128], index: 10, kind: input, shape index: {}]
  %s11 = inlined_call_operand.vmem [shape: bf16[128,128], index: 11, kind: input, shape index: {}]
  %s12 = inlined_call_operand.vmem [shape: f32[8,256], index: 12, kind: input, shape index: {}]
  %s13 = inlined_call_operand.vmem [shape: f32[8,128], index: 13, kind: input, shape index: {}]
  %s14 = inlined_call_operand.vmem [shape: bf16[16,128], index: 14, kind: output, shape index: {}]
  %s15 = sld [smem:[#allocation0]]
  $region66: #{_spacenet_forward_impl.1} parent=0
    _
  %s17 = ssub.s32 1, %s15
  %s18 = scalar_select 0, %s17, %s15
  // Predicated region
  $region2: #{_spacenet_forward_impl.1} parent=0 // pred_check
    _
  $region3: #{_spacenet_forward_impl.1} parent=0 // pred_check_branch
    %20 = sbr.rel (0) target = $region5
  $region4: #{_spacenet_forward_impl.1} parent=0 // pred_region
    _
  $region5: #{_spacenet_forward_impl.1} parent=0 // pred_fallthru
    _
  // Predicated region
  $region6: #{_spacenet_forward_impl.1} parent=0 // pred_check
    _
  $region7: #{_spacenet_forward_impl.1} parent=0 // pred_check_branch
    %22 = sbr.rel (0) target = $region9
  $region8: #{_spacenet_forward_impl.1} parent=0 // pred_region
    _
  $region9: #{_spacenet_forward_impl.1} parent=0 // pred_fallthru
    _
  // Predicated region
  $region10: #{_spacenet_forward_impl.1} parent=0 // pred_check
    _
  $region11: #{_spacenet_forward_impl.1} parent=0 // pred_check_branch
    %24 = sbr.rel (0) target = $region13
  $region12: #{_spacenet_forward_impl.1} parent=0 // pred_region
    _
  $region13: #{_spacenet_forward_impl.1} parent=0 // pred_fallthru
    _
  // Predicated region
  $region14: #{_spacenet_forward_impl.1} parent=0 // pred_check
    _
  $region15: #{_spacenet_forward_impl.1} parent=0 // pred_check_branch
    %26 = sbr.rel (0) target = $region17
  $region16: #{_spacenet_forward_impl.1} parent=0 // pred_region
    _
  $region17: #{_spacenet_forward_impl.1} parent=0 // pred_fallthru
    _
  // Predicated region
  $region18: #{_spacenet_forward_impl.1} parent=0 // pred_check
    _
  $region19: #{_spacenet_forward_impl.1} parent=0 // pred_check_branch
    %28 = sbr.rel (0) target = $region21
  $region20: #{_spacenet_forward_impl.1} parent=0 // pred_region
    _
  $region21: #{_spacenet_forward_impl.1} parent=0 // pred_fallthru
    _
  // Predicated region
  $region22: #{_spacenet_forward_impl.1} parent=0 // pred_check
    _
  $region23: #{_spacenet_forward_impl.1} parent=0 // pred_check_branch
    %30 = sbr.rel (0) target = $region25
  $region24: #{_spacenet_forward_impl.1} parent=0 // pred_region
    _
  $region25: #{_spacenet_forward_impl.1} parent=0 // pred_fallthru
    _
  // Predicated region
  $region26: #{_spacenet_forward_impl.1} parent=0 // pred_check
    _
  $region27: #{_spacenet_forward_impl.1} parent=0 // pred_check_branch
    %32 = sbr.rel (0) target = $region29
  $region28: #{_spacenet_forward_impl.1} parent=0 // pred_region
    _
  $region29: #{_spacenet_forward_impl.1} parent=0 // pred_fallthru
    _
  // Predicated region
  $region30: #{_spacenet_forward_impl.1} parent=0 // pred_check
    _
  $region31: #{_spacenet_forward_impl.1} parent=0 // pred_check_branch
    %34 = sbr.rel (0) target = $region33
  $region32: #{_spacenet_forward_impl.1} parent=0 // pred_region
    _
  $region33: #{_spacenet_forward_impl.1} parent=0 // pred_fallthru
    _
  // Predicated region
  $region34: #{_spacenet_forward_impl.1} parent=0 // pred_check
    _
  $region35: #{_spacenet_forward_impl.1} parent=0 // pred_check_branch
    %36 = sbr.rel (0) target = $region37
  $region36: #{_spacenet_forward_impl.1} parent=0 // pred_region
    _
  $region37: #{_spacenet_forward_impl.1} parent=0 // pred_fallthru
    _
  // Predicated region
  $region38: #{_spacenet_forward_impl.1} parent=0 // pred_check
    _
  $region39: #{_spacenet_forward_impl.1} parent=0 // pred_check_branch
    %38 = sbr.rel (0) target = $region41
  $region40: #{_spacenet_forward_impl.1} parent=0 // pred_region
    _
  $region41: #{_spacenet_forward_impl.1} parent=0 // pred_fallthru
    _
  // Predicated region
  $region42: #{_spacenet_forward_impl.1} parent=0 // pred_check
    _
  $region43: #{_spacenet_forward_impl.1} parent=0 // pred_check_branch
    %40 = sbr.rel (0) target = $region45
  $region44: #{_spacenet_forward_impl.1} parent=0 // pred_region
    _
  $region45: #{_spacenet_forward_impl.1} parent=0 // pred_fallthru
    _
  // Predicated region
  $region46: #{_spacenet_forward_impl.1} parent=0 // pred_check
    _
  $region47: #{_spacenet_forward_impl.1} parent=0 // pred_check_branch
    %42 = sbr.rel (0) target = $region49
  $region48: #{_spacenet_forward_impl.1} parent=0 // pred_region
    _
  $region49: #{_spacenet_forward_impl.1} parent=0 // pred_fallthru
    _
  // Predicated region
  $region50: #{_spacenet_forward_impl.1} parent=0 // pred_check
    _
  $region51: #{_spacenet_forward_impl.1} parent=0 // pred_check_branch
    %44 = sbr.rel (0) target = $region53
  $region52: #{_spacenet_forward_impl.1} parent=0 // pred_region
    _
  $region53: #{_spacenet_forward_impl.1} parent=0 // pred_fallthru
    _
  // Predicated region
  $region54: #{_spacenet_forward_impl.1} parent=0 // pred_check
    _
  $region55: #{_spacenet_forward_impl.1} parent=0 // pred_check_branch
    %46 = sbr.rel (0) target = $region57
  $region56: #{_spacenet_forward_impl.1} parent=0 // pred_region
    _
  $region57: #{_spacenet_forward_impl.1} parent=0 // pred_fallthru
    _
  %v48 = vld [vmem:[%s0] sm:$0xf]
  %v49 = vld [vmem:[%s0 + $0x4] sm:$0xf]
  %v50 = vld [vmem:[%s1] sm:$0xff]
  %v51 = vld [vmem:[%s1 + $0x8] sm:$0xff]
  %v52 = vld [vmem:[%s1 + $0x10] sm:$0xff]
  %v53 = vld [vmem:[%s1 + $0x18] sm:$0xff]
  %v54 = vld [vmem:[%s1 + $0x20] sm:$0xff]
  %v55 = vld [vmem:[%s1 + $0x28] sm:$0xff]
  %v56 = vld [vmem:[%s1 + $0x30] sm:$0xff]
  %v57 = vld [vmem:[%s1 + $0x38] sm:$0xff]
  %v58 = vld [vmem:[%s1 + $0x40] sm:$0xff]
  %v59 = vld [vmem:[%s1 + $0x48] sm:$0xff]
  %v60 = vld [vmem:[%s1 + $0x50] sm:$0xff]
  %v61 = vld [vmem:[%s1 + $0x58] sm:$0xff]
  %v62 = vld [vmem:[%s1 + $0x60] sm:$0xff]
  %v63 = vld [vmem:[%s1 + $0x68] sm:$0xff]
  %v64 = vld [vmem:[%s1 + $0x70] sm:$0xff]
  %v65 = vld [vmem:[%s1 + $0x78] sm:$0xff]
  %v66 = vld [vmem:[%s12] ss:$8 sm:$0x3]
  %v68 = vlaneseq
  %v69 = vshrl.u32 %v68, 7
  %v70 = vsub.s32 0, %v69
  %v71 = vrot.slane %v66, %v70
  %v72 = vlaneseq
  %v73 = vshrl.u32 %v72, 7
  %v74 = vsub.s32 1, %v73
  %v75 = vrot.slane %v66, %v74
  %v80 = vunpack.c.l.b16 %v48
  %v81 = vunpack.c.l.b16 %v49
  %v82 = vpack.c.b16 %v81, %v80
  %v100 = vunpack.c.l.b16 %v50
  %v101 = vunpack.c.h.b16 %v50
  %v102 = vunpack.c.l.b16 %v51
  %v103 = vunpack.c.h.b16 %v51
  %v104 = vunpack.c.l.b16 %v52
  %v105 = vunpack.c.h.b16 %v52
  %v106 = vunpack.c.l.b16 %v53
  %v107 = vunpack.c.h.b16 %v53
  %v108 = vunpack.c.l.b16 %v54
  %v109 = vunpack.c.h.b16 %v54
  %v110 = vunpack.c.l.b16 %v55
  %v111 = vunpack.c.h.b16 %v55
  %v112 = vunpack.c.l.b16 %v56
  %v113 = vunpack.c.h.b16 %v56
  %v114 = vunpack.c.l.b16 %v57
  %v115 = vunpack.c.h.b16 %v57
  %v116 = vunpack.c.l.b16 %v58
  %v117 = vunpack.c.h.b16 %v58
  %v118 = vunpack.c.l.b16 %v59
  %v119 = vunpack.c.h.b16 %v59
  %v120 = vunpack.c.l.b16 %v60
  %v121 = vunpack.c.h.b16 %v60
  %v122 = vunpack.c.l.b16 %v61
  %v123 = vunpack.c.h.b16 %v61
  %v124 = vunpack.c.l.b16 %v62
  %v125 = vunpack.c.h.b16 %v62
  %v126 = vunpack.c.l.b16 %v63
  %v127 = vunpack.c.h.b16 %v63
  %v128 = vunpack.c.l.b16 %v64
  %v129 = vunpack.c.h.b16 %v64
  %v130 = vunpack.c.l.b16 %v65
  %v131 = vunpack.c.h.b16 %v65
  %v132 = vpack.c.b16 %v102, %v100
  %v133 = vpack.c.b16 %v103, %v101
  %v134 = vpack.c.b16 %v106, %v104
  %v135 = vpack.c.b16 %v107, %v105
  %v136 = vpack.c.b16 %v110, %v108
  %v137 = vpack.c.b16 %v111, %v109
  %v138 = vpack.c.b16 %v114, %v112
  %v139 = vpack.c.b16 %v115, %v113
  %v140 = vpack.c.b16 %v118, %v116
  %v141 = vpack.c.b16 %v119, %v117
  %v142 = vpack.c.b16 %v122, %v120
  %v143 = vpack.c.b16 %v123, %v121
  %v144 = vpack.c.b16 %v126, %v124
  %v145 = vpack.c.b16 %v127, %v125
  %v146 = vpack.c.b16 %v130, %v128
  %v147 = vpack.c.b16 %v131, %v129
  %164 = vmatprep.subr.bf16.mxu0 %v133
  %165 = vmatpush1.bf16.msra.mxu0 %v132
  %166 = vmatprep.subr.bf16.mxu0 %v135
  %167 = vmatpush1.bf16.msra.mxu0 %v134
  %168 = vmatprep.subr.bf16.mxu0 %v137
  %169 = vmatpush1.bf16.msra.mxu0 %v136
  %170 = vmatprep.subr.bf16.mxu0 %v139
  %171 = vmatpush1.bf16.msra.mxu0 %v138
  %172 = vmatprep.subr.bf16.mxu0 %v141
  %173 = vmatpush1.bf16.msra.mxu0 %v140
  %174 = vmatprep.subr.bf16.mxu0 %v143
  %175 = vmatpush1.bf16.msra.mxu0 %v142
  %176 = vmatprep.subr.bf16.mxu0 %v145
  %177 = vmatpush1.bf16.msra.mxu0 %v144
  %178 = vmatprep.subr.bf16.mxu0 %v147
  %179 = vmatpush1.bf16.msra.mxu0 %v146
  %180 = vmatprep.subr.bf16.mxu0 0
  %181 = vmatpush1.bf16.msra.mxu0 0
  %182 = vmatprep.subr.bf16.mxu0 0
  %183 = vmatpush1.bf16.msra.mxu0 0
  %184 = vmatprep.subr.bf16.mxu0 0
  %185 = vmatpush1.bf16.msra.mxu0 0
  %186 = vmatprep.subr.bf16.mxu0 0
  %187 = vmatpush1.bf16.msra.mxu0 0
  %188 = vmatprep.subr.bf16.mxu0 0
  %189 = vmatpush1.bf16.msra.mxu0 0
  %190 = vmatprep.subr.bf16.mxu0 0
  %191 = vmatpush1.bf16.msra.mxu0 0
  %192 = vmatprep.subr.bf16.mxu0 0
  %193 = vmatpush1.bf16.msra.mxu0 0
  %194 = vmatprep.subr.bf16.mxu0 0
  %195 = vmatpush1.bf16.msra.mxu0 0
  %196 = vmatprep.mubr.bf16.mxu0 0
  %197 = vmatmul.mubr.bf16.gmra.mrb[0].mxu0 %v82
  %v198 = vpop.f32.mrb[0].mxu0
  %v199 = vadd.f32 %v71, %v198
  %v200 = vpop.f32.mrb[0].mxu0
  %v201 = vadd.f32 %v75, %v200
  %v202 = vpop.f32.mrb[0].mxu0
  %v203 = vadd.f32 %v71, %v202
  %v204 = vpop.f32.mrb[0].mxu0
  %v205 = vadd.f32 %v75, %v204
  %206 = vdwg.mxu0
  %v207 = vmax.f32 %v199, 0.0
  %v208 = vmax.f32 %v201, 0.0
  %v209 = vmax.f32 %v203, 0.0
  %v210 = vmax.f32 %v205, 0.0
  %v211 = vpack.c.bf16 %v209, %v207
  %v212 = vpack.c.bf16 %v210, %v208
  %v213 = vld [vmem:[%s2] sm:$0xff]
  %v214 = vld [vmem:[%s2 + $0x8] sm:$0xff]
  %v215 = vld [vmem:[%s2 + $0x10] sm:$0xff]
  %v216 = vld [vmem:[%s2 + $0x18] sm:$0xff]
  %v217 = vld [vmem:[%s2 + $0x20] sm:$0xff]
  %v218 = vld [vmem:[%s2 + $0x28] sm:$0xff]
  %v219 = vld [vmem:[%s2 + $0x30] sm:$0xff]
  %v220 = vld [vmem:[%s2 + $0x38] sm:$0xff]
  %v221 = vld [vmem:[%s2 + $0x40] sm:$0xff]
  %v222 = vld [vmem:[%s2 + $0x48] sm:$0xff]
  %v223 = vld [vmem:[%s2 + $0x50] sm:$0xff]
  %v224 = vld [vmem:[%s2 + $0x58] sm:$0xff]
  %v225 = vld [vmem:[%s2 + $0x60] sm:$0xff]
  %v226 = vld [vmem:[%s2 + $0x68] sm:$0xff]
  %v227 = vld [vmem:[%s2 + $0x70] sm:$0xff]
  %v228 = vld [vmem:[%s2 + $0x78] sm:$0xff]
  %v229 = vld [vmem:[%s2 + $0x80] sm:$0xff]
  %v230 = vld [vmem:[%s2 + $0x88] sm:$0xff]
  %v231 = vld [vmem:[%s2 + $0x90] sm:$0xff]
  %v232 = vld [vmem:[%s2 + $0x98] sm:$0xff]
  %v233 = vld [vmem:[%s2 + $0xa0] sm:$0xff]
  %v234 = vld [vmem:[%s2 + $0xa8] sm:$0xff]
  %v235 = vld [vmem:[%s2 + $0xb0] sm:$0xff]
  %v236 = vld [vmem:[%s2 + $0xb8] sm:$0xff]
  %v237 = vld [vmem:[%s2 + $0xc0] sm:$0xff]
  %v238 = vld [vmem:[%s2 + $0xc8] sm:$0xff]
  %v239 = vld [vmem:[%s2 + $0xd0] sm:$0xff]
  %v240 = vld [vmem:[%s2 + $0xd8] sm:$0xff]
  %v241 = vld [vmem:[%s2 + $0xe0] sm:$0xff]
  %v242 = vld [vmem:[%s2 + $0xe8] sm:$0xff]
  %v243 = vld [vmem:[%s2 + $0xf0] sm:$0xff]
  %v244 = vld [vmem:[%s2 + $0xf8] sm:$0xff]
  %s245 = scalar_lea.vmem %s12, 1
  %v246 = vld [vmem:[%s245] ss:$8 sm:$0x3]
  %v248 = vlaneseq
  %v249 = vshrl.u32 %v248, 7
  %v250 = vsub.s32 0, %v249
  %v251 = vrot.slane %v246, %v250
  %v252 = vlaneseq
  %v253 = vshrl.u32 %v252, 7
  %v254 = vsub.s32 1, %v253
  %v255 = vrot.slane %v246, %v254
  %v290 = vunpack.c.l.b16 %v213
  %v291 = vunpack.c.h.b16 %v213
  %v292 = vunpack.c.l.b16 %v214
  %v293 = vunpack.c.h.b16 %v214
  %v294 = vunpack.c.l.b16 %v215
  %v295 = vunpack.c.h.b16 %v215
  %v296 = vunpack.c.l.b16 %v216
  %v297 = vunpack.c.h.b16 %v216
  %v298 = vunpack.c.l.b16 %v217
  %v299 = vunpack.c.h.b16 %v217
  %v300 = vunpack.c.l.b16 %v218
  %v301 = vunpack.c.h.b16 %v218
  %v302 = vunpack.c.l.b16 %v219
  %v303 = vunpack.c.h.b16 %v219
  %v304 = vunpack.c.l.b16 %v220
  %v305 = vunpack.c.h.b16 %v220
  %v306 = vunpack.c.l.b16 %v221
  %v307 = vunpack.c.h.b16 %v221
  %v308 = vunpack.c.l.b16 %v222
  %v309 = vunpack.c.h.b16 %v222
  %v310 = vunpack.c.l.b16 %v223
  %v311 = vunpack.c.h.b16 %v223
  %v312 = vunpack.c.l.b16 %v224
  %v313 = vunpack.c.h.b16 %v224
  %v314 = vunpack.c.l.b16 %v225
  %v315 = vunpack.c.h.b16 %v225
  %v316 = vunpack.c.l.b16 %v226
  %v317 = vunpack.c.h.b16 %v226
  %v318 = vunpack.c.l.b16 %v227
  %v319 = vunpack.c.h.b16 %v227
  %v320 = vunpack.c.l.b16 %v228
  %v321 = vunpack.c.h.b16 %v228
  %v322 = vunpack.c.l.b16 %v229
  %v323 = vunpack.c.h.b16 %v229
  %v324 = vunpack.c.l.b16 %v230
  %v325 = vunpack.c.h.b16 %v230
  %v326 = vunpack.c.l.b16 %v231
  %v327 = vunpack.c.h.b16 %v231
  %v328 = vunpack.c.l.b16 %v232
  %v329 = vunpack.c.h.b16 %v232
  %v330 = vunpack.c.l.b16 %v233
  %v331 = vunpack.c.h.b16 %v233
  %v332 = vunpack.c.l.b16 %v234
  %v333 = vunpack.c.h.b16 %v234
  %v334 = vunpack.c.l.b16 %v235
  %v335 = vunpack.c.h.b16 %v235
  %v336 = vunpack.c.l.b16 %v236
  %v337 = vunpack.c.h.b16 %v236
  %v338 = vunpack.c.l.b16 %v237
  %v339 = vunpack.c.h.b16 %v237
  %v340 = vunpack.c.l.b16 %v238
  %v341 = vunpack.c.h.b16 %v238
  %v342 = vunpack.c.l.b16 %v239
  %v343 = vunpack.c.h.b16 %v239
  %v344 = vunpack.c.l.b16 %v240
  %v345 = vunpack.c.h.b16 %v240
  %v346 = vunpack.c.l.b16 %v241
  %v347 = vunpack.c.h.b16 %v241
  %v348 = vunpack.c.l.b16 %v242
  %v349 = vunpack.c.h.b16 %v242
  %v350 = vunpack.c.l.b16 %v243
  %v351 = vunpack.c.h.b16 %v243
  %v352 = vunpack.c.l.b16 %v244
  %v353 = vunpack.c.h.b16 %v244
  %v354 = vpack.c.b16 %v292, %v290
  %v355 = vpack.c.b16 %v293, %v291
  %v356 = vpack.c.b16 %v296, %v294
  %v357 = vpack.c.b16 %v297, %v295
  %v358 = vpack.c.b16 %v300, %v298
  %v359 = vpack.c.b16 %v301, %v299
  %v360 = vpack.c.b16 %v304, %v302
  %v361 = vpack.c.b16 %v305, %v303
  %v362 = vpack.c.b16 %v308, %v306
  %v363 = vpack.c.b16 %v309, %v307
  %v364 = vpack.c.b16 %v312, %v310
  %v365 = vpack.c.b16 %v313, %v311
  %v366 = vpack.c.b16 %v316, %v314
  %v367 = vpack.c.b16 %v317, %v315
  %v368 = vpack.c.b16 %v320, %v318
  %v369 = vpack.c.b16 %v321, %v319
  %v370 = vpack.c.b16 %v324, %v322
  %v371 = vpack.c.b16 %v325, %v323
  %v372 = vpack.c.b16 %v328, %v326
  %v373 = vpack.c.b16 %v329, %v327
  %v374 = vpack.c.b16 %v332, %v330
  %v375 = vpack.c.b16 %v333, %v331
  %v376 = vpack.c.b16 %v336, %v334
  %v377 = vpack.c.b16 %v337, %v335
  %v378 = vpack.c.b16 %v340, %v338
  %v379 = vpack.c.b16 %v341, %v339
  %v380 = vpack.c.b16 %v344, %v342
  %v381 = vpack.c.b16 %v345, %v343
  %v382 = vpack.c.b16 %v348, %v346
  %v383 = vpack.c.b16 %v349, %v347
  %v384 = vpack.c.b16 %v352, %v350
  %v385 = vpack.c.b16 %v353, %v351
  %418 = vmatprep.subr.bf16.mxu0 %v355
  %419 = vmatpush1.bf16.msra.mxu0 %v354
  %420 = vmatprep.subr.bf16.mxu0 %v357
  %421 = vmatpush1.bf16.msra.mxu0 %v356
  %422 = vmatprep.subr.bf16.mxu0 %v359
  %423 = vmatpush1.bf16.msra.mxu0 %v358
  %424 = vmatprep.subr.bf16.mxu0 %v361
  %425 = vmatpush1.bf16.msra.mxu0 %v360
  %426 = vmatprep.subr.bf16.mxu0 %v363
  %427 = vmatpush1.bf16.msra.mxu0 %v362
  %428 = vmatprep.subr.bf16.mxu0 %v365
  %429 = vmatpush1.bf16.msra.mxu0 %v364
  %430 = vmatprep.subr.bf16.mxu0 %v367
  %431 = vmatpush1.bf16.msra.mxu0 %v366
  %432 = vmatprep.subr.bf16.mxu0 %v369
  %433 = vmatpush1.bf16.msra.mxu0 %v368
  %434 = vmatprep.subr.bf16.mxu0 %v371
  %435 = vmatpush1.bf16.msra.mxu0 %v370
  %436 = vmatprep.subr.bf16.mxu0 %v373
  %437 = vmatpush1.bf16.msra.mxu0 %v372
  %438 = vmatprep.subr.bf16.mxu0 %v375
  %439 = vmatpush1.bf16.msra.mxu0 %v374
  %440 = vmatprep.subr.bf16.mxu0 %v377
  %441 = vmatpush1.bf16.msra.mxu0 %v376
  %442 = vmatprep.subr.bf16.mxu0 %v379
  %443 = vmatpush1.bf16.msra.mxu0 %v378
  %444 = vmatprep.subr.bf16.mxu0 %v381
  %445 = vmatpush1.bf16.msra.mxu0 %v380
  %446 = vmatprep.subr.bf16.mxu0 %v383
  %447 = vmatpush1.bf16.msra.mxu0 %v382
  %448 = vmatprep.subr.bf16.mxu0 %v385
  %449 = vmatpush1.bf16.msra.mxu0 %v384
  %450 = vmatprep.mubr.bf16.mxu0 %v212
  %451 = vmatmul.mubr.bf16.gmra.mrb[0].mxu0 %v211
  %v452 = vpop.f32.mrb[0].mxu0
  %v453 = vadd.f32 %v251, %v452
  %v454 = vpop.f32.mrb[0].mxu0
  %v455 = vadd.f32 %v255, %v454
  %v456 = vpop.f32.mrb[0].mxu0
  %v457 = vadd.f32 %v251, %v456
  %v458 = vpop.f32.mrb[0].mxu0
  %v459 = vadd.f32 %v255, %v458
  %460 = vdwg.mxu0
  %v461 = vmax.f32 %v453, 0.0
  %v462 = vmax.f32 %v455, 0.0
  %v463 = vmax.f32 %v457, 0.0
  %v464 = vmax.f32 %v459, 0.0
  %v465 = vpack.c.bf16 %v463, %v461
  %v466 = vpack.c.bf16 %v464, %v462
  %v467 = vld [vmem:[%s3] sm:$0xff]
  %v468 = vld [vmem:[%s3 + $0x8] sm:$0xff]
  %v469 = vld [vmem:[%s3 + $0x10] sm:$0xff]
  %v470 = vld [vmem:[%s3 + $0x18] sm:$0xff]
  %v471 = vld [vmem:[%s3 + $0x20] sm:$0xff]
  %v472 = vld [vmem:[%s3 + $0x28] sm:$0xff]
  %v473 = vld [vmem:[%s3 + $0x30] sm:$0xff]
  %v474 = vld [vmem:[%s3 + $0x38] sm:$0xff]
  %v475 = vld [vmem:[%s3 + $0x40] sm:$0xff]
  %v476 = vld [vmem:[%s3 + $0x48] sm:$0xff]
  %v477 = vld [vmem:[%s3 + $0x50] sm:$0xff]
  %v478 = vld [vmem:[%s3 + $0x58] sm:$0xff]
  %v479 = vld [vmem:[%s3 + $0x60] sm:$0xff]
  %v480 = vld [vmem:[%s3 + $0x68] sm:$0xff]
  %v481 = vld [vmem:[%s3 + $0x70] sm:$0xff]
  %v482 = vld [vmem:[%s3 + $0x78] sm:$0xff]
  %v483 = vld [vmem:[%s3 + $0x80] sm:$0xff]
  %v484 = vld [vmem:[%s3 + $0x88] sm:$0xff]
  %v485 = vld [vmem:[%s3 + $0x90] sm:$0xff]
  %v486 = vld [vmem:[%s3 + $0x98] sm:$0xff]
  %v487 = vld [vmem:[%s3 + $0xa0] sm:$0xff]
  %v488 = vld [vmem:[%s3 + $0xa8] sm:$0xff]
  %v489 = vld [vmem:[%s3 + $0xb0] sm:$0xff]
  %v490 = vld [vmem:[%s3 + $0xb8] sm:$0xff]
  %v491 = vld [vmem:[%s3 + $0xc0] sm:$0xff]
  %v492 = vld [vmem:[%s3 + $0xc8] sm:$0xff]
  %v493 = vld [vmem:[%s3 + $0xd0] sm:$0xff]
  %v494 = vld [vmem:[%s3 + $0xd8] sm:$0xff]
  %v495 = vld [vmem:[%s3 + $0xe0] sm:$0xff]
  %v496 = vld [vmem:[%s3 + $0xe8] sm:$0xff]
  %v497 = vld [vmem:[%s3 + $0xf0] sm:$0xff]
  %v498 = vld [vmem:[%s3 + $0xf8] sm:$0xff]
  %s499 = scalar_lea.vmem %s12, 2
  %v500 = vld [vmem:[%s499] ss:$8 sm:$0x3]
  %v502 = vlaneseq
  %v503 = vshrl.u32 %v502, 7
  %v504 = vsub.s32 0, %v503
  %v505 = vrot.slane %v500, %v504
  %v506 = vlaneseq
  %v507 = vshrl.u32 %v506, 7
  %v508 = vsub.s32 1, %v507
  %v509 = vrot.slane %v500, %v508
  %v544 = vunpack.c.l.b16 %v467
  %v545 = vunpack.c.h.b16 %v467
  %v546 = vunpack.c.l.b16 %v468
  %v547 = vunpack.c.h.b16 %v468
  %v548 = vunpack.c.l.b16 %v469
  %v549 = vunpack.c.h.b16 %v469
  %v550 = vunpack.c.l.b16 %v470
  %v551 = vunpack.c.h.b16 %v470
  %v552 = vunpack.c.l.b16 %v471
  %v553 = vunpack.c.h.b16 %v471
  %v554 = vunpack.c.l.b16 %v472
  %v555 = vunpack.c.h.b16 %v472
  %v556 = vunpack.c.l.b16 %v473
  %v557 = vunpack.c.h.b16 %v473
  %v558 = vunpack.c.l.b16 %v474
  %v559 = vunpack.c.h.b16 %v474
  %v560 = vunpack.c.l.b16 %v475
  %v561 = vunpack.c.h.b16 %v475
  %v562 = vunpack.c.l.b16 %v476
  %v563 = vunpack.c.h.b16 %v476
  %v564 = vunpack.c.l.b16 %v477
  %v565 = vunpack.c.h.b16 %v477
  %v566 = vunpack.c.l.b16 %v478
  %v567 = vunpack.c.h.b16 %v478
  %v568 = vunpack.c.l.b16 %v479
  %v569 = vunpack.c.h.b16 %v479
  %v570 = vunpack.c.l.b16 %v480
  %v571 = vunpack.c.h.b16 %v480
  %v572 = vunpack.c.l.b16 %v481
  %v573 = vunpack.c.h.b16 %v481
  %v574 = vunpack.c.l.b16 %v482
  %v575 = vunpack.c.h.b16 %v482
  %v576 = vunpack.c.l.b16 %v483
  %v577 = vunpack.c.h.b16 %v483
  %v578 = vunpack.c.l.b16 %v484
  %v579 = vunpack.c.h.b16 %v484
  %v580 = vunpack.c.l.b16 %v485
  %v581 = vunpack.c.h.b16 %v485
  %v582 = vunpack.c.l.b16 %v486
  %v583 = vunpack.c.h.b16 %v486
  %v584 = vunpack.c.l.b16 %v487
  %v585 = vunpack.c.h.b16 %v487
  %v586 = vunpack.c.l.b16 %v488
  %v587 = vunpack.c.h.b16 %v488
  %v588 = vunpack.c.l.b16 %v489
  %v589 = vunpack.c.h.b16 %v489
  %v590 = vunpack.c.l.b16 %v490
  %v591 = vunpack.c.h.b16 %v490
  %v592 = vunpack.c.l.b16 %v491
  %v593 = vunpack.c.h.b16 %v491
  %v594 = vunpack.c.l.b16 %v492
  %v595 = vunpack.c.h.b16 %v492
  %v596 = vunpack.c.l.b16 %v493
  %v597 = vunpack.c.h.b16 %v493
  %v598 = vunpack.c.l.b16 %v494
  %v599 = vunpack.c.h.b16 %v494
  %v600 = vunpack.c.l.b16 %v495
  %v601 = vunpack.c.h.b16 %v495
  %v602 = vunpack.c.l.b16 %v496
  %v603 = vunpack.c.h.b16 %v496
  %v604 = vunpack.c.l.b16 %v497
  %v605 = vunpack.c.h.b16 %v497
  %v606 = vunpack.c.l.b16 %v498
  %v607 = vunpack.c.h.b16 %v498
  %v608 = vpack.c.b16 %v546, %v544
  %v609 = vpack.c.b16 %v547, %v545
  %v610 = vpack.c.b16 %v550, %v548
  %v611 = vpack.c.b16 %v551, %v549
  %v612 = vpack.c.b16 %v554, %v552
  %v613 = vpack.c.b16 %v555, %v553
  %v614 = vpack.c.b16 %v558, %v556
  %v615 = vpack.c.b16 %v559, %v557
  %v616 = vpack.c.b16 %v562, %v560
  %v617 = vpack.c.b16 %v563, %v561
  %v618 = vpack.c.b16 %v566, %v564
  %v619 = vpack.c.b16 %v567, %v565
  %v620 = vpack.c.b16 %v570, %v568
  %v621 = vpack.c.b16 %v571, %v569
  %v622 = vpack.c.b16 %v574, %v572
  %v623 = vpack.c.b16 %v575, %v573
  %v624 = vpack.c.b16 %v578, %v576
  %v625 = vpack.c.b16 %v579, %v577
  %v626 = vpack.c.b16 %v582, %v580
  %v627 = vpack.c.b16 %v583, %v581
  %v628 = vpack.c.b16 %v586, %v584
  %v629 = vpack.c.b16 %v587, %v585
  %v630 = vpack.c.b16 %v590, %v588
  %v631 = vpack.c.b16 %v591, %v589
  %v632 = vpack.c.b16 %v594, %v592
  %v633 = vpack.c.b16 %v595, %v593
  %v634 = vpack.c.b16 %v598, %v596
  %v635 = vpack.c.b16 %v599, %v597
  %v636 = vpack.c.b16 %v602, %v600
  %v637 = vpack.c.b16 %v603, %v601
  %v638 = vpack.c.b16 %v606, %v604
  %v639 = vpack.c.b16 %v607, %v605
  %672 = vmatprep.subr.bf16.mxu0 %v609
  %673 = vmatpush1.bf16.msra.mxu0 %v608
  %674 = vmatprep.subr.bf16.mxu0 %v611
  %675 = vmatpush1.bf16.msra.mxu0 %v610
  %676 = vmatprep.subr.bf16.mxu0 %v613
  %677 = vmatpush1.bf16.msra.mxu0 %v612
  %678 = vmatprep.subr.bf16.mxu0 %v615
  %679 = vmatpush1.bf16.msra.mxu0 %v614
  %680 = vmatprep.subr.bf16.mxu0 %v617
  %681 = vmatpush1.bf16.msra.mxu0 %v616
  %682 = vmatprep.subr.bf16.mxu0 %v619
  %683 = vmatpush1.bf16.msra.mxu0 %v618
  %684 = vmatprep.subr.bf16.mxu0 %v621
  %685 = vmatpush1.bf16.msra.mxu0 %v620
  %686 = vmatprep.subr.bf16.mxu0 %v623
  %687 = vmatpush1.bf16.msra.mxu0 %v622
  %688 = vmatprep.subr.bf16.mxu0 %v625
  %689 = vmatpush1.bf16.msra.mxu0 %v624
  %690 = vmatprep.subr.bf16.mxu0 %v627
  %691 = vmatpush1.bf16.msra.mxu0 %v626
  %692 = vmatprep.subr.bf16.mxu0 %v629
  %693 = vmatpush1.bf16.msra.mxu0 %v628
  %694 = vmatprep.subr.bf16.mxu0 %v631
  %695 = vmatpush1.bf16.msra.mxu0 %v630
  %696 = vmatprep.subr.bf16.mxu0 %v633
  %697 = vmatpush1.bf16.msra.mxu0 %v632
  %698 = vmatprep.subr.bf16.mxu0 %v635
  %699 = vmatpush1.bf16.msra.mxu0 %v634
  %700 = vmatprep.subr.bf16.mxu0 %v637
  %701 = vmatpush1.bf16.msra.mxu0 %v636
  %702 = vmatprep.subr.bf16.mxu0 %v639
  %703 = vmatpush1.bf16.msra.mxu0 %v638
  %704 = vmatprep.mubr.bf16.mxu0 %v466
  %705 = vmatmul.mubr.bf16.gmra.mrb[0].mxu0 %v465
  %v706 = vpop.f32.mrb[0].mxu0
  %v707 = vadd.f32 %v505, %v706
  %v708 = vpop.f32.mrb[0].mxu0
  %v709 = vadd.f32 %v509, %v708
  %v710 = vpop.f32.mrb[0].mxu0
  %v711 = vadd.f32 %v505, %v710
  %v712 = vpop.f32.mrb[0].mxu0
  %v713 = vadd.f32 %v509, %v712
  %714 = vdwg.mxu0
  %v715 = vmax.f32 %v707, 0.0
  %v716 = vmax.f32 %v709, 0.0
  %v717 = vmax.f32 %v711, 0.0
  %v718 = vmax.f32 %v713, 0.0
  %v719 = vpack.c.bf16 %v717, %v715
  %v720 = vpack.c.bf16 %v718, %v716
  %v721 = vld [vmem:[%s4] sm:$0xff]
  %v722 = vld [vmem:[%s4 + $0x8] sm:$0xff]
  %v723 = vld [vmem:[%s4 + $0x10] sm:$0xff]
  %v724 = vld [vmem:[%s4 + $0x18] sm:$0xff]
  %v725 = vld [vmem:[%s4 + $0x20] sm:$0xff]
  %v726 = vld [vmem:[%s4 + $0x28] sm:$0xff]
  %v727 = vld [vmem:[%s4 + $0x30] sm:$0xff]
  %v728 = vld [vmem:[%s4 + $0x38] sm:$0xff]
  %v729 = vld [vmem:[%s4 + $0x40] sm:$0xff]
  %v730 = vld [vmem:[%s4 + $0x48] sm:$0xff]
  %v731 = vld [vmem:[%s4 + $0x50] sm:$0xff]
  %v732 = vld [vmem:[%s4 + $0x58] sm:$0xff]
  %v733 = vld [vmem:[%s4 + $0x60] sm:$0xff]
  %v734 = vld [vmem:[%s4 + $0x68] sm:$0xff]
  %v735 = vld [vmem:[%s4 + $0x70] sm:$0xff]
  %v736 = vld [vmem:[%s4 + $0x78] sm:$0xff]
  %v737 = vld [vmem:[%s4 + $0x80] sm:$0xff]
  %v738 = vld [vmem:[%s4 + $0x88] sm:$0xff]
  %v739 = vld [vmem:[%s4 + $0x90] sm:$0xff]
  %v740 = vld [vmem:[%s4 + $0x98] sm:$0xff]
  %v741 = vld [vmem:[%s4 + $0xa0] sm:$0xff]
  %v742 = vld [vmem:[%s4 + $0xa8] sm:$0xff]
  %v743 = vld [vmem:[%s4 + $0xb0] sm:$0xff]
  %v744 = vld [vmem:[%s4 + $0xb8] sm:$0xff]
  %v745 = vld [vmem:[%s4 + $0xc0] sm:$0xff]
  %v746 = vld [vmem:[%s4 + $0xc8] sm:$0xff]
  %v747 = vld [vmem:[%s4 + $0xd0] sm:$0xff]
  %v748 = vld [vmem:[%s4 + $0xd8] sm:$0xff]
  %v749 = vld [vmem:[%s4 + $0xe0] sm:$0xff]
  %v750 = vld [vmem:[%s4 + $0xe8] sm:$0xff]
  %v751 = vld [vmem:[%s4 + $0xf0] sm:$0xff]
  %v752 = vld [vmem:[%s4 + $0xf8] sm:$0xff]
  %s753 = scalar_lea.vmem %s12, 3
  %v754 = vld [vmem:[%s753] ss:$8 sm:$0x3]
  %v756 = vlaneseq
  %v757 = vshrl.u32 %v756, 7
  %v758 = vsub.s32 0, %v757
  %v759 = vrot.slane %v754, %v758
  %v760 = vlaneseq
  %v761 = vshrl.u32 %v760, 7
  %v762 = vsub.s32 1, %v761
  %v763 = vrot.slane %v754, %v762
  %v798 = vunpack.c.l.b16 %v721
  %v799 = vunpack.c.h.b16 %v721
  %v800 = vunpack.c.l.b16 %v722
  %v801 = vunpack.c.h.b16 %v722
  %v802 = vunpack.c.l.b16 %v723
  %v803 = vunpack.c.h.b16 %v723
  %v804 = vunpack.c.l.b16 %v724
  %v805 = vunpack.c.h.b16 %v724
  %v806 = vunpack.c.l.b16 %v725
  %v807 = vunpack.c.h.b16 %v725
  %v808 = vunpack.c.l.b16 %v726
  %v809 = vunpack.c.h.b16 %v726
  %v810 = vunpack.c.l.b16 %v727
  %v811 = vunpack.c.h.b16 %v727
  %v812 = vunpack.c.l.b16 %v728
  %v813 = vunpack.c.h.b16 %v728
  %v814 = vunpack.c.l.b16 %v729
  %v815 = vunpack.c.h.b16 %v729
  %v816 = vunpack.c.l.b16 %v730
  %v817 = vunpack.c.h.b16 %v730
  %v818 = vunpack.c.l.b16 %v731
  %v819 = vunpack.c.h.b16 %v731
  %v820 = vunpack.c.l.b16 %v732
  %v821 = vunpack.c.h.b16 %v732
  %v822 = vunpack.c.l.b16 %v733
  %v823 = vunpack.c.h.b16 %v733
  %v824 = vunpack.c.l.b16 %v734
  %v825 = vunpack.c.h.b16 %v734
  %v826 = vunpack.c.l.b16 %v735
  %v827 = vunpack.c.h.b16 %v735
  %v828 = vunpack.c.l.b16 %v736
  %v829 = vunpack.c.h.b16 %v736
  %v830 = vunpack.c.l.b16 %v737
  %v831 = vunpack.c.h.b16 %v737
  %v832 = vunpack.c.l.b16 %v738
  %v833 = vunpack.c.h.b16 %v738
  %v834 = vunpack.c.l.b16 %v739
  %v835 = vunpack.c.h.b16 %v739
  %v836 = vunpack.c.l.b16 %v740
  %v837 = vunpack.c.h.b16 %v740
  %v838 = vunpack.c.l.b16 %v741
  %v839 = vunpack.c.h.b16 %v741
  %v840 = vunpack.c.l.b16 %v742
  %v841 = vunpack.c.h.b16 %v742
  %v842 = vunpack.c.l.b16 %v743
  %v843 = vunpack.c.h.b16 %v743
  %v844 = vunpack.c.l.b16 %v744
  %v845 = vunpack.c.h.b16 %v744
  %v846 = vunpack.c.l.b16 %v745
  %v847 = vunpack.c.h.b16 %v745
  %v848 = vunpack.c.l.b16 %v746
  %v849 = vunpack.c.h.b16 %v746
  %v850 = vunpack.c.l.b16 %v747
  %v851 = vunpack.c.h.b16 %v747
  %v852 = vunpack.c.l.b16 %v748
  %v853 = vunpack.c.h.b16 %v748
  %v854 = vunpack.c.l.b16 %v749
  %v855 = vunpack.c.h.b16 %v749
  %v856 = vunpack.c.l.b16 %v750
  %v857 = vunpack.c.h.b16 %v750
  %v858 = vunpack.c.l.b16 %v751
  %v859 = vunpack.c.h.b16 %v751
  %v860 = vunpack.c.l.b16 %v752
  %v861 = vunpack.c.h.b16 %v752
  %v862 = vpack.c.b16 %v800, %v798
  %v863 = vpack.c.b16 %v801, %v799
  %v864 = vpack.c.b16 %v804, %v802
  %v865 = vpack.c.b16 %v805, %v803
  %v866 = vpack.c.b16 %v808, %v806
  %v867 = vpack.c.b16 %v809, %v807
  %v868 = vpack.c.b16 %v812, %v810
  %v869 = vpack.c.b16 %v813, %v811
  %v870 = vpack.c.b16 %v816, %v814
  %v871 = vpack.c.b16 %v817, %v815
  %v872 = vpack.c.b16 %v820, %v818
  %v873 = vpack.c.b16 %v821, %v819
  %v874 = vpack.c.b16 %v824, %v822
  %v875 = vpack.c.b16 %v825, %v823
  %v876 = vpack.c.b16 %v828, %v826
  %v877 = vpack.c.b16 %v829, %v827
  %v878 = vpack.c.b16 %v832, %v830
  %v879 = vpack.c.b16 %v833, %v831
  %v880 = vpack.c.b16 %v836, %v834
  %v881 = vpack.c.b16 %v837, %v835
  %v882 = vpack.c.b16 %v840, %v838
  %v883 = vpack.c.b16 %v841, %v839
  %v884 = vpack.c.b16 %v844, %v842
  %v885 = vpack.c.b16 %v845, %v843
  %v886 = vpack.c.b16 %v848, %v846
  %v887 = vpack.c.b16 %v849, %v847
  %v888 = vpack.c.b16 %v852, %v850
  %v889 = vpack.c.b16 %v853, %v851
  %v890 = vpack.c.b16 %v856, %v854
  %v891 = vpack.c.b16 %v857, %v855
  %v892 = vpack.c.b16 %v860, %v858
  %v893 = vpack.c.b16 %v861, %v859
  %926 = vmatprep.subr.bf16.mxu0 %v863
  %927 = vmatpush1.bf16.msra.mxu0 %v862
  %928 = vmatprep.subr.bf16.mxu0 %v865
  %929 = vmatpush1.bf16.msra.mxu0 %v864
  %930 = vmatprep.subr.bf16.mxu0 %v867
  %931 = vmatpush1.bf16.msra.mxu0 %v866
  %932 = vmatprep.subr.bf16.mxu0 %v869
  %933 = vmatpush1.bf16.msra.mxu0 %v868
  %934 = vmatprep.subr.bf16.mxu0 %v871
  %935 = vmatpush1.bf16.msra.mxu0 %v870
  %936 = vmatprep.subr.bf16.mxu0 %v873
  %937 = vmatpush1.bf16.msra.mxu0 %v872
  %938 = vmatprep.subr.bf16.mxu0 %v875
  %939 = vmatpush1.bf16.msra.mxu0 %v874
  %940 = vmatprep.subr.bf16.mxu0 %v877
  %941 = vmatpush1.bf16.msra.mxu0 %v876
  %942 = vmatprep.subr.bf16.mxu0 %v879
  %943 = vmatpush1.bf16.msra.mxu0 %v878
  %944 = vmatprep.subr.bf16.mxu0 %v881
  %945 = vmatpush1.bf16.msra.mxu0 %v880
  %946 = vmatprep.subr.bf16.mxu0 %v883
  %947 = vmatpush1.bf16.msra.mxu0 %v882
  %948 = vmatprep.subr.bf16.mxu0 %v885
  %949 = vmatpush1.bf16.msra.mxu0 %v884
  %950 = vmatprep.subr.bf16.mxu0 %v887
  %951 = vmatpush1.bf16.msra.mxu0 %v886
  %952 = vmatprep.subr.bf16.mxu0 %v889
  %953 = vmatpush1.bf16.msra.mxu0 %v888
  %954 = vmatprep.subr.bf16.mxu0 %v891
  %955 = vmatpush1.bf16.msra.mxu0 %v890
  %956 = vmatprep.subr.bf16.mxu0 %v893
  %957 = vmatpush1.bf16.msra.mxu0 %v892
  %958 = vmatprep.mubr.bf16.mxu0 %v720
  %959 = vmatmul.mubr.bf16.gmra.mrb[0].mxu0 %v719
  %v960 = vpop.f32.mrb[0].mxu0
  %v961 = vadd.f32 %v759, %v960
  %v962 = vpop.f32.mrb[0].mxu0
  %v963 = vadd.f32 %v763, %v962
  %v964 = vpop.f32.mrb[0].mxu0
  %v965 = vadd.f32 %v759, %v964
  %v966 = vpop.f32.mrb[0].mxu0
  %v967 = vadd.f32 %v763, %v966
  %968 = vdwg.mxu0
  %v969 = vmax.f32 %v961, 0.0
  %v970 = vmax.f32 %v963, 0.0
  %v971 = vmax.f32 %v965, 0.0
  %v972 = vmax.f32 %v967, 0.0
  %v973 = vpack.c.bf16 %v971, %v969
  %v974 = vpack.c.bf16 %v972, %v970
  %v975 = vld [vmem:[%s5] sm:$0xff]
  %v976 = vld [vmem:[%s5 + $0x8] sm:$0xff]
  %v977 = vld [vmem:[%s5 + $0x10] sm:$0xff]
  %v978 = vld [vmem:[%s5 + $0x18] sm:$0xff]
  %v979 = vld [vmem:[%s5 + $0x20] sm:$0xff]
  %v980 = vld [vmem:[%s5 + $0x28] sm:$0xff]
  %v981 = vld [vmem:[%s5 + $0x30] sm:$0xff]
  %v982 = vld [vmem:[%s5 + $0x38] sm:$0xff]
  %v983 = vld [vmem:[%s5 + $0x40] sm:$0xff]
  %v984 = vld [vmem:[%s5 + $0x48] sm:$0xff]
  %v985 = vld [vmem:[%s5 + $0x50] sm:$0xff]
  %v986 = vld [vmem:[%s5 + $0x58] sm:$0xff]
  %v987 = vld [vmem:[%s5 + $0x60] sm:$0xff]
  %v988 = vld [vmem:[%s5 + $0x68] sm:$0xff]
  %v989 = vld [vmem:[%s5 + $0x70] sm:$0xff]
  %v990 = vld [vmem:[%s5 + $0x78] sm:$0xff]
  %v991 = vld [vmem:[%s5 + $0x80] sm:$0xff]
  %v992 = vld [vmem:[%s5 + $0x88] sm:$0xff]
  %v993 = vld [vmem:[%s5 + $0x90] sm:$0xff]
  %v994 = vld [vmem:[%s5 + $0x98] sm:$0xff]
  %v995 = vld [vmem:[%s5 + $0xa0] sm:$0xff]
  %v996 = vld [vmem:[%s5 + $0xa8] sm:$0xff]
  %v997 = vld [vmem:[%s5 + $0xb0] sm:$0xff]
  %v998 = vld [vmem:[%s5 + $0xb8] sm:$0xff]
  %v999 = vld [vmem:[%s5 + $0xc0] sm:$0xff]
  %v1000 = vld [vmem:[%s5 + $0xc8] sm:$0xff]
  %v1001 = vld [vmem:[%s5 + $0xd0] sm:$0xff]
  %v1002 = vld [vmem:[%s5 + $0xd8] sm:$0xff]
  %v1003 = vld [vmem:[%s5 + $0xe0] sm:$0xff]
  %v1004 = vld [vmem:[%s5 + $0xe8] sm:$0xff]
  %v1005 = vld [vmem:[%s5 + $0xf0] sm:$0xff]
  %v1006 = vld [vmem:[%s5 + $0xf8] sm:$0xff]
  %v1007 = vld [vmem:[%s6] sm:$0xff]
  %v1008 = vld [vmem:[%s6 + $0x8] sm:$0xff]
  %v1009 = vld [vmem:[%s6 + $0x10] sm:$0xff]
  %v1010 = vld [vmem:[%s6 + $0x18] sm:$0xff]
  %v1011 = vld [vmem:[%s6 + $0x20] sm:$0xff]
  %v1012 = vld [vmem:[%s6 + $0x28] sm:$0xff]
  %v1013 = vld [vmem:[%s6 + $0x30] sm:$0xff]
  %v1014 = vld [vmem:[%s6 + $0x38] sm:$0xff]
  %v1015 = vld [vmem:[%s6 + $0x40] sm:$0xff]
  %v1016 = vld [vmem:[%s6 + $0x48] sm:$0xff]
  %v1017 = vld [vmem:[%s6 + $0x50] sm:$0xff]
  %v1018 = vld [vmem:[%s6 + $0x58] sm:$0xff]
  %v1019 = vld [vmem:[%s6 + $0x60] sm:$0xff]
  %v1020 = vld [vmem:[%s6 + $0x68] sm:$0xff]
  %v1021 = vld [vmem:[%s6 + $0x70] sm:$0xff]
  %v1022 = vld [vmem:[%s6 + $0x78] sm:$0xff]
  %v1039 = vunpack.c.l.b16 %v1007
  %v1040 = vunpack.c.h.b16 %v1007
  %v1041 = vunpack.c.l.b16 %v1008
  %v1042 = vunpack.c.h.b16 %v1008
  %v1043 = vunpack.c.l.b16 %v1009
  %v1044 = vunpack.c.h.b16 %v1009
  %v1045 = vunpack.c.l.b16 %v1010
  %v1046 = vunpack.c.h.b16 %v1010
  %v1047 = vunpack.c.l.b16 %v1011
  %v1048 = vunpack.c.h.b16 %v1011
  %v1049 = vunpack.c.l.b16 %v1012
  %v1050 = vunpack.c.h.b16 %v1012
  %v1051 = vunpack.c.l.b16 %v1013
  %v1052 = vunpack.c.h.b16 %v1013
  %v1053 = vunpack.c.l.b16 %v1014
  %v1054 = vunpack.c.h.b16 %v1014
  %v1055 = vunpack.c.l.b16 %v1015
  %v1056 = vunpack.c.h.b16 %v1015
  %v1057 = vunpack.c.l.b16 %v1016
  %v1058 = vunpack.c.h.b16 %v1016
  %v1059 = vunpack.c.l.b16 %v1017
  %v1060 = vunpack.c.h.b16 %v1017
  %v1061 = vunpack.c.l.b16 %v1018
  %v1062 = vunpack.c.h.b16 %v1018
  %v1063 = vunpack.c.l.b16 %v1019
  %v1064 = vunpack.c.h.b16 %v1019
  %v1065 = vunpack.c.l.b16 %v1020
  %v1066 = vunpack.c.h.b16 %v1020
  %v1067 = vunpack.c.l.b16 %v1021
  %v1068 = vunpack.c.h.b16 %v1021
  %v1069 = vunpack.c.l.b16 %v1022
  %v1070 = vunpack.c.h.b16 %v1022
  %v1071 = vpack.c.b16 %v1041, %v1039
  %v1072 = vpack.c.b16 %v1042, %v1040
  %v1073 = vpack.c.b16 %v1045, %v1043
  %v1074 = vpack.c.b16 %v1046, %v1044
  %v1075 = vpack.c.b16 %v1049, %v1047
  %v1076 = vpack.c.b16 %v1050, %v1048
  %v1077 = vpack.c.b16 %v1053, %v1051
  %v1078 = vpack.c.b16 %v1054, %v1052
  %v1079 = vpack.c.b16 %v1057, %v1055
  %v1080 = vpack.c.b16 %v1058, %v1056
  %v1081 = vpack.c.b16 %v1061, %v1059
  %v1082 = vpack.c.b16 %v1062, %v1060
  %v1083 = vpack.c.b16 %v1065, %v1063
  %v1084 = vpack.c.b16 %v1066, %v1064
  %v1085 = vpack.c.b16 %v1069, %v1067
  %v1086 = vpack.c.b16 %v1070, %v1068
  %1103 = vmatprep.subr.bf16.mxu0 %v1072
  %1104 = vmatpush1.bf16.msra.mxu0 %v1071
  %1105 = vmatprep.subr.bf16.mxu0 %v1074
  %1106 = vmatpush1.bf16.msra.mxu0 %v1073
  %1107 = vmatprep.subr.bf16.mxu0 %v1076
  %1108 = vmatpush1.bf16.msra.mxu0 %v1075
  %1109 = vmatprep.subr.bf16.mxu0 %v1078
  %1110 = vmatpush1.bf16.msra.mxu0 %v1077
  %1111 = vmatprep.subr.bf16.mxu0 %v1080
  %1112 = vmatpush1.bf16.msra.mxu0 %v1079
  %1113 = vmatprep.subr.bf16.mxu0 %v1082
  %1114 = vmatpush1.bf16.msra.mxu0 %v1081
  %1115 = vmatprep.subr.bf16.mxu0 %v1084
  %1116 = vmatpush1.bf16.msra.mxu0 %v1083
  %1117 = vmatprep.subr.bf16.mxu0 %v1086
  %1118 = vmatpush1.bf16.msra.mxu0 %v1085
  %1119 = vmatprep.subr.bf16.mxu0 0
  %1120 = vmatpush1.bf16.msra.mxu0 0
  %1121 = vmatprep.subr.bf16.mxu0 0
  %1122 = vmatpush1.bf16.msra.mxu0 0
  %1123 = vmatprep.subr.bf16.mxu0 0
  %1124 = vmatpush1.bf16.msra.mxu0 0
  %1125 = vmatprep.subr.bf16.mxu0 0
  %1126 = vmatpush1.bf16.msra.mxu0 0
  %1127 = vmatprep.subr.bf16.mxu0 0
  %1128 = vmatpush1.bf16.msra.mxu0 0
  %1129 = vmatprep.subr.bf16.mxu0 0
  %1130 = vmatpush1.bf16.msra.mxu0 0
  %1131 = vmatprep.subr.bf16.mxu0 0
  %1132 = vmatpush1.bf16.msra.mxu0 0
  %1133 = vmatprep.subr.bf16.mxu0 0
  %1134 = vmatpush1.bf16.msra.mxu0 0
  %1135 = vmatprep.mubr.bf16.mxu0 0
  %1136 = vmatmul.mubr.bf16.gmra.mrb[0].mxu0 %v82
  %v1137 = vpop.f32.mrb[0].mxu0
  %v1138 = vadd.f32 0.0, %v1137
  %v1139 = vpop.f32.mrb[0].mxu0
  %v1140 = vadd.f32 0.0, %v1139
  %v1141 = vpop.f32.mrb[0].mxu0
  %v1142 = vadd.f32 0.0, %v1141
  %v1143 = vpop.f32.mrb[0].mxu0
  %v1144 = vadd.f32 0.0, %v1143
  %1145 = vdwg.mxu0
  %v1178 = vunpack.c.l.b16 %v975
  %v1179 = vunpack.c.h.b16 %v975
  %v1180 = vunpack.c.l.b16 %v976
  %v1181 = vunpack.c.h.b16 %v976
  %v1182 = vunpack.c.l.b16 %v977
  %v1183 = vunpack.c.h.b16 %v977
  %v1184 = vunpack.c.l.b16 %v978
  %v1185 = vunpack.c.h.b16 %v978
  %v1186 = vunpack.c.l.b16 %v979
  %v1187 = vunpack.c.h.b16 %v979
  %v1188 = vunpack.c.l.b16 %v980
  %v1189 = vunpack.c.h.b16 %v980
  %v1190 = vunpack.c.l.b16 %v981
  %v1191 = vunpack.c.h.b16 %v981
  %v1192 = vunpack.c.l.b16 %v982
  %v1193 = vunpack.c.h.b16 %v982
  %v1194 = vunpack.c.l.b16 %v983
  %v1195 = vunpack.c.h.b16 %v983
  %v1196 = vunpack.c.l.b16 %v984
  %v1197 = vunpack.c.h.b16 %v984
  %v1198 = vunpack.c.l.b16 %v985
  %v1199 = vunpack.c.h.b16 %v985
  %v1200 = vunpack.c.l.b16 %v986
  %v1201 = vunpack.c.h.b16 %v986
  %v1202 = vunpack.c.l.b16 %v987
  %v1203 = vunpack.c.h.b16 %v987
  %v1204 = vunpack.c.l.b16 %v988
  %v1205 = vunpack.c.h.b16 %v988
  %v1206 = vunpack.c.l.b16 %v989
  %v1207 = vunpack.c.h.b16 %v989
  %v1208 = vunpack.c.l.b16 %v990
  %v1209 = vunpack.c.h.b16 %v990
  %v1210 = vunpack.c.l.b16 %v991
  %v1211 = vunpack.c.h.b16 %v991
  %v1212 = vunpack.c.l.b16 %v992
  %v1213 = vunpack.c.h.b16 %v992
  %v1214 = vunpack.c.l.b16 %v993
  %v1215 = vunpack.c.h.b16 %v993
  %v1216 = vunpack.c.l.b16 %v994
  %v1217 = vunpack.c.h.b16 %v994
  %v1218 = vunpack.c.l.b16 %v995
  %v1219 = vunpack.c.h.b16 %v995
  %v1220 = vunpack.c.l.b16 %v996
  %v1221 = vunpack.c.h.b16 %v996
  %v1222 = vunpack.c.l.b16 %v997
  %v1223 = vunpack.c.h.b16 %v997
  %v1224 = vunpack.c.l.b16 %v998
  %v1225 = vunpack.c.h.b16 %v998
  %v1226 = vunpack.c.l.b16 %v999
  %v1227 = vunpack.c.h.b16 %v999
  %v1228 = vunpack.c.l.b16 %v1000
  %v1229 = vunpack.c.h.b16 %v1000
  %v1230 = vunpack.c.l.b16 %v1001
  %v1231 = vunpack.c.h.b16 %v1001
  %v1232 = vunpack.c.l.b16 %v1002
  %v1233 = vunpack.c.h.b16 %v1002
  %v1234 = vunpack.c.l.b16 %v1003
  %v1235 = vunpack.c.h.b16 %v1003
  %v1236 = vunpack.c.l.b16 %v1004
  %v1237 = vunpack.c.h.b16 %v1004
  %v1238 = vunpack.c.l.b16 %v1005
  %v1239 = vunpack.c.h.b16 %v1005
  %v1240 = vunpack.c.l.b16 %v1006
  %v1241 = vunpack.c.h.b16 %v1006
  %v1242 = vpack.c.b16 %v1180, %v1178
  %v1243 = vpack.c.b16 %v1181, %v1179
  %v1244 = vpack.c.b16 %v1184, %v1182
  %v1245 = vpack.c.b16 %v1185, %v1183
  %v1246 = vpack.c.b16 %v1188, %v1186
  %v1247 = vpack.c.b16 %v1189, %v1187
  %v1248 = vpack.c.b16 %v1192, %v1190
  %v1249 = vpack.c.b16 %v1193, %v1191
  %v1250 = vpack.c.b16 %v1196, %v1194
  %v1251 = vpack.c.b16 %v1197, %v1195
  %v1252 = vpack.c.b16 %v1200, %v1198
  %v1253 = vpack.c.b16 %v1201, %v1199
  %v1254 = vpack.c.b16 %v1204, %v1202
  %v1255 = vpack.c.b16 %v1205, %v1203
  %v1256 = vpack.c.b16 %v1208, %v1206
  %v1257 = vpack.c.b16 %v1209, %v1207
  %v1258 = vpack.c.b16 %v1212, %v1210
  %v1259 = vpack.c.b16 %v1213, %v1211
  %v1260 = vpack.c.b16 %v1216, %v1214
  %v1261 = vpack.c.b16 %v1217, %v1215
  %v1262 = vpack.c.b16 %v1220, %v1218
  %v1263 = vpack.c.b16 %v1221, %v1219
  %v1264 = vpack.c.b16 %v1224, %v1222
  %v1265 = vpack.c.b16 %v1225, %v1223
  %v1266 = vpack.c.b16 %v1228, %v1226
  %v1267 = vpack.c.b16 %v1229, %v1227
  %v1268 = vpack.c.b16 %v1232, %v1230
  %v1269 = vpack.c.b16 %v1233, %v1231
  %v1270 = vpack.c.b16 %v1236, %v1234
  %v1271 = vpack.c.b16 %v1237, %v1235
  %v1272 = vpack.c.b16 %v1240, %v1238
  %v1273 = vpack.c.b16 %v1241, %v1239
  %1306 = vmatprep.subr.bf16.mxu0 %v1243
  %1307 = vmatpush1.bf16.msra.mxu0 %v1242
  %1308 = vmatprep.subr.bf16.mxu0 %v1245
  %1309 = vmatpush1.bf16.msra.mxu0 %v1244
  %1310 = vmatprep.subr.bf16.mxu0 %v1247
  %1311 = vmatpush1.bf16.msra.mxu0 %v1246
  %1312 = vmatprep.subr.bf16.mxu0 %v1249
  %1313 = vmatpush1.bf16.msra.mxu0 %v1248
  %1314 = vmatprep.subr.bf16.mxu0 %v1251
  %1315 = vmatpush1.bf16.msra.mxu0 %v1250
  %1316 = vmatprep.subr.bf16.mxu0 %v1253
  %1317 = vmatpush1.bf16.msra.mxu0 %v1252
  %1318 = vmatprep.subr.bf16.mxu0 %v1255
  %1319 = vmatpush1.bf16.msra.mxu0 %v1254
  %1320 = vmatprep.subr.bf16.mxu0 %v1257
  %1321 = vmatpush1.bf16.msra.mxu0 %v1256
  %1322 = vmatprep.subr.bf16.mxu0 %v1259
  %1323 = vmatpush1.bf16.msra.mxu0 %v1258
  %1324 = vmatprep.subr.bf16.mxu0 %v1261
  %1325 = vmatpush1.bf16.msra.mxu0 %v1260
  %1326 = vmatprep.subr.bf16.mxu0 %v1263
  %1327 = vmatpush1.bf16.msra.mxu0 %v1262
  %1328 = vmatprep.subr.bf16.mxu0 %v1265
  %1329 = vmatpush1.bf16.msra.mxu0 %v1264
  %1330 = vmatprep.subr.bf16.mxu0 %v1267
  %1331 = vmatpush1.bf16.msra.mxu0 %v1266
  %1332 = vmatprep.subr.bf16.mxu0 %v1269
  %1333 = vmatpush1.bf16.msra.mxu0 %v1268
  %1334 = vmatprep.subr.bf16.mxu0 %v1271
  %1335 = vmatpush1.bf16.msra.mxu0 %v1270
  %1336 = vmatprep.subr.bf16.mxu0 %v1273
  %1337 = vmatpush1.bf16.msra.mxu0 %v1272
  %1338 = vmatprep.mubr.bf16.mxu0 %v974
  %1339 = vmatmul.mubr.bf16.gmra.mrb[0].mxu0 %v973
  %v1340 = vpop.f32.mrb[0].mxu0
  %v1341 = vadd.f32 %v1138, %v1340
  %v1342 = vpop.f32.mrb[0].mxu0
  %v1343 = vadd.f32 %v1140, %v1342
  %v1344 = vpop.f32.mrb[0].mxu0
  %v1345 = vadd.f32 %v1142, %v1344
  %v1346 = vpop.f32.mrb[0].mxu0
  %v1347 = vadd.f32 %v1144, %v1346
  %1348 = vdwg.mxu0
  %s1349 = scalar_lea.vmem %s12, 4
  %v1350 = vld [vmem:[%s1349] ss:$8 sm:$0x3]
  %v1352 = vlaneseq
  %v1353 = vshrl.u32 %v1352, 7
  %v1354 = vsub.s32 0, %v1353
  %v1355 = vrot.slane %v1350, %v1354
  %v1356 = vlaneseq
  %v1357 = vshrl.u32 %v1356, 7
  %v1358 = vsub.s32 1, %v1357
  %v1359 = vrot.slane %v1350, %v1358
  %v1362 = vadd.f32 %v1341, %v1355
  %v1363 = vadd.f32 %v1343, %v1359
  %v1364 = vadd.f32 %v1345, %v1355
  %v1365 = vadd.f32 %v1347, %v1359
  %v1366 = vmax.f32 %v1362, 0.0
  %v1367 = vmax.f32 %v1363, 0.0
  %v1368 = vmax.f32 %v1364, 0.0
  %v1369 = vmax.f32 %v1365, 0.0
  %v1370 = vpack.c.bf16 %v1368, %v1366
  %v1371 = vpack.c.bf16 %v1369, %v1367
  %v1372 = vld [vmem:[%s7] sm:$0xff]
  %v1373 = vld [vmem:[%s7 + $0x8] sm:$0xff]
  %v1374 = vld [vmem:[%s7 + $0x10] sm:$0xff]
  %v1375 = vld [vmem:[%s7 + $0x18] sm:$0xff]
  %v1376 = vld [vmem:[%s7 + $0x20] sm:$0xff]
  %v1377 = vld [vmem:[%s7 + $0x28] sm:$0xff]
  %v1378 = vld [vmem:[%s7 + $0x30] sm:$0xff]
  %v1379 = vld [vmem:[%s7 + $0x38] sm:$0xff]
  %v1380 = vld [vmem:[%s7 + $0x40] sm:$0xff]
  %v1381 = vld [vmem:[%s7 + $0x48] sm:$0xff]
  %v1382 = vld [vmem:[%s7 + $0x50] sm:$0xff]
  %v1383 = vld [vmem:[%s7 + $0x58] sm:$0xff]
  %v1384 = vld [vmem:[%s7 + $0x60] sm:$0xff]
  %v1385 = vld [vmem:[%s7 + $0x68] sm:$0xff]
  %v1386 = vld [vmem:[%s7 + $0x70] sm:$0xff]
  %v1387 = vld [vmem:[%s7 + $0x78] sm:$0xff]
  %v1388 = vld [vmem:[%s7 + $0x80] sm:$0xff]
  %v1389 = vld [vmem:[%s7 + $0x88] sm:$0xff]
  %v1390 = vld [vmem:[%s7 + $0x90] sm:$0xff]
  %v1391 = vld [vmem:[%s7 + $0x98] sm:$0xff]
  %v1392 = vld [vmem:[%s7 + $0xa0] sm:$0xff]
  %v1393 = vld [vmem:[%s7 + $0xa8] sm:$0xff]
  %v1394 = vld [vmem:[%s7 + $0xb0] sm:$0xff]
  %v1395 = vld [vmem:[%s7 + $0xb8] sm:$0xff]
  %v1396 = vld [vmem:[%s7 + $0xc0] sm:$0xff]
  %v1397 = vld [vmem:[%s7 + $0xc8] sm:$0xff]
  %v1398 = vld [vmem:[%s7 + $0xd0] sm:$0xff]
  %v1399 = vld [vmem:[%s7 + $0xd8] sm:$0xff]
  %v1400 = vld [vmem:[%s7 + $0xe0] sm:$0xff]
  %v1401 = vld [vmem:[%s7 + $0xe8] sm:$0xff]
  %v1402 = vld [vmem:[%s7 + $0xf0] sm:$0xff]
  %v1403 = vld [vmem:[%s7 + $0xf8] sm:$0xff]
  %s1404 = scalar_lea.vmem %s12, 5
  %v1405 = vld [vmem:[%s1404] ss:$8 sm:$0x3]
  %v1407 = vlaneseq
  %v1408 = vshrl.u32 %v1407, 7
  %v1409 = vsub.s32 0, %v1408
  %v1410 = vrot.slane %v1405, %v1409
  %v1411 = vlaneseq
  %v1412 = vshrl.u32 %v1411, 7
  %v1413 = vsub.s32 1, %v1412
  %v1414 = vrot.slane %v1405, %v1413
  %v1449 = vunpack.c.l.b16 %v1372
  %v1450 = vunpack.c.h.b16 %v1372
  %v1451 = vunpack.c.l.b16 %v1373
  %v1452 = vunpack.c.h.b16 %v1373
  %v1453 = vunpack.c.l.b16 %v1374
  %v1454 = vunpack.c.h.b16 %v1374
  %v1455 = vunpack.c.l.b16 %v1375
  %v1456 = vunpack.c.h.b16 %v1375
  %v1457 = vunpack.c.l.b16 %v1376
  %v1458 = vunpack.c.h.b16 %v1376
  %v1459 = vunpack.c.l.b16 %v1377
  %v1460 = vunpack.c.h.b16 %v1377
  %v1461 = vunpack.c.l.b16 %v1378
  %v1462 = vunpack.c.h.b16 %v1378
  %v1463 = vunpack.c.l.b16 %v1379
  %v1464 = vunpack.c.h.b16 %v1379
  %v1465 = vunpack.c.l.b16 %v1380
  %v1466 = vunpack.c.h.b16 %v1380
  %v1467 = vunpack.c.l.b16 %v1381
  %v1468 = vunpack.c.h.b16 %v1381
  %v1469 = vunpack.c.l.b16 %v1382
  %v1470 = vunpack.c.h.b16 %v1382
  %v1471 = vunpack.c.l.b16 %v1383
  %v1472 = vunpack.c.h.b16 %v1383
  %v1473 = vunpack.c.l.b16 %v1384
  %v1474 = vunpack.c.h.b16 %v1384
  %v1475 = vunpack.c.l.b16 %v1385
  %v1476 = vunpack.c.h.b16 %v1385
  %v1477 = vunpack.c.l.b16 %v1386
  %v1478 = vunpack.c.h.b16 %v1386
  %v1479 = vunpack.c.l.b16 %v1387
  %v1480 = vunpack.c.h.b16 %v1387
  %v1481 = vunpack.c.l.b16 %v1388
  %v1482 = vunpack.c.h.b16 %v1388
  %v1483 = vunpack.c.l.b16 %v1389
  %v1484 = vunpack.c.h.b16 %v1389
  %v1485 = vunpack.c.l.b16 %v1390
  %v1486 = vunpack.c.h.b16 %v1390
  %v1487 = vunpack.c.l.b16 %v1391
  %v1488 = vunpack.c.h.b16 %v1391
  %v1489 = vunpack.c.l.b16 %v1392
  %v1490 = vunpack.c.h.b16 %v1392
  %v1491 = vunpack.c.l.b16 %v1393
  %v1492 = vunpack.c.h.b16 %v1393
  %v1493 = vunpack.c.l.b16 %v1394
  %v1494 = vunpack.c.h.b16 %v1394
  %v1495 = vunpack.c.l.b16 %v1395
  %v1496 = vunpack.c.h.b16 %v1395
  %v1497 = vunpack.c.l.b16 %v1396
  %v1498 = vunpack.c.h.b16 %v1396
  %v1499 = vunpack.c.l.b16 %v1397
  %v1500 = vunpack.c.h.b16 %v1397
  %v1501 = vunpack.c.l.b16 %v1398
  %v1502 = vunpack.c.h.b16 %v1398
  %v1503 = vunpack.c.l.b16 %v1399
  %v1504 = vunpack.c.h.b16 %v1399
  %v1505 = vunpack.c.l.b16 %v1400
  %v1506 = vunpack.c.h.b16 %v1400
  %v1507 = vunpack.c.l.b16 %v1401
  %v1508 = vunpack.c.h.b16 %v1401
  %v1509 = vunpack.c.l.b16 %v1402
  %v1510 = vunpack.c.h.b16 %v1402
  %v1511 = vunpack.c.l.b16 %v1403
  %v1512 = vunpack.c.h.b16 %v1403
  %v1513 = vpack.c.b16 %v1451, %v1449
  %v1514 = vpack.c.b16 %v1452, %v1450
  %v1515 = vpack.c.b16 %v1455, %v1453
  %v1516 = vpack.c.b16 %v1456, %v1454
  %v1517 = vpack.c.b16 %v1459, %v1457
  %v1518 = vpack.c.b16 %v1460, %v1458
  %v1519 = vpack.c.b16 %v1463, %v1461
  %v1520 = vpack.c.b16 %v1464, %v1462
  %v1521 = vpack.c.b16 %v1467, %v1465
  %v1522 = vpack.c.b16 %v1468, %v1466
  %v1523 = vpack.c.b16 %v1471, %v1469
  %v1524 = vpack.c.b16 %v1472, %v1470
  %v1525 = vpack.c.b16 %v1475, %v1473
  %v1526 = vpack.c.b16 %v1476, %v1474
  %v1527 = vpack.c.b16 %v1479, %v1477
  %v1528 = vpack.c.b16 %v1480, %v1478
  %v1529 = vpack.c.b16 %v1483, %v1481
  %v1530 = vpack.c.b16 %v1484, %v1482
  %v1531 = vpack.c.b16 %v1487, %v1485
  %v1532 = vpack.c.b16 %v1488, %v1486
  %v1533 = vpack.c.b16 %v1491, %v1489
  %v1534 = vpack.c.b16 %v1492, %v1490
  %v1535 = vpack.c.b16 %v1495, %v1493
  %v1536 = vpack.c.b16 %v1496, %v1494
  %v1537 = vpack.c.b16 %v1499, %v1497
  %v1538 = vpack.c.b16 %v1500, %v1498
  %v1539 = vpack.c.b16 %v1503, %v1501
  %v1540 = vpack.c.b16 %v1504, %v1502
  %v1541 = vpack.c.b16 %v1507, %v1505
  %v1542 = vpack.c.b16 %v1508, %v1506
  %v1543 = vpack.c.b16 %v1511, %v1509
  %v1544 = vpack.c.b16 %v1512, %v1510
  %1577 = vmatprep.subr.bf16.mxu0 %v1514
  %1578 = vmatpush1.bf16.msra.mxu0 %v1513
  %1579 = vmatprep.subr.bf16.mxu0 %v1516
  %1580 = vmatpush1.bf16.msra.mxu0 %v1515
  %1581 = vmatprep.subr.bf16.mxu0 %v1518
  %1582 = vmatpush1.bf16.msra.mxu0 %v1517
  %1583 = vmatprep.subr.bf16.mxu0 %v1520
  %1584 = vmatpush1.bf16.msra.mxu0 %v1519
  %1585 = vmatprep.subr.bf16.mxu0 %v1522
  %1586 = vmatpush1.bf16.msra.mxu0 %v1521
  %1587 = vmatprep.subr.bf16.mxu0 %v1524
  %1588 = vmatpush1.bf16.msra.mxu0 %v1523
  %1589 = vmatprep.subr.bf16.mxu0 %v1526
  %1590 = vmatpush1.bf16.msra.mxu0 %v1525
  %1591 = vmatprep.subr.bf16.mxu0 %v1528
  %1592 = vmatpush1.bf16.msra.mxu0 %v1527
  %1593 = vmatprep.subr.bf16.mxu0 %v1530
  %1594 = vmatpush1.bf16.msra.mxu0 %v1529
  %1595 = vmatprep.subr.bf16.mxu0 %v1532
  %1596 = vmatpush1.bf16.msra.mxu0 %v1531
  %1597 = vmatprep.subr.bf16.mxu0 %v1534
  %1598 = vmatpush1.bf16.msra.mxu0 %v1533
  %1599 = vmatprep.subr.bf16.mxu0 %v1536
  %1600 = vmatpush1.bf16.msra.mxu0 %v1535
  %1601 = vmatprep.subr.bf16.mxu0 %v1538
  %1602 = vmatpush1.bf16.msra.mxu0 %v1537
  %1603 = vmatprep.subr.bf16.mxu0 %v1540
  %1604 = vmatpush1.bf16.msra.mxu0 %v1539
  %1605 = vmatprep.subr.bf16.mxu0 %v1542
  %1606 = vmatpush1.bf16.msra.mxu0 %v1541
  %1607 = vmatprep.subr.bf16.mxu0 %v1544
  %1608 = vmatpush1.bf16.msra.mxu0 %v1543
  %1609 = vmatprep.mubr.bf16.mxu0 %v1371
  %1610 = vmatmul.mubr.bf16.gmra.mrb[0].mxu0 %v1370
  %v1611 = vpop.f32.mrb[0].mxu0
  %v1612 = vadd.f32 %v1410, %v1611
  %v1613 = vpop.f32.mrb[0].mxu0
  %v1614 = vadd.f32 %v1414, %v1613
  %v1615 = vpop.f32.mrb[0].mxu0
  %v1616 = vadd.f32 %v1410, %v1615
  %v1617 = vpop.f32.mrb[0].mxu0
  %v1618 = vadd.f32 %v1414, %v1617
  %1619 = vdwg.mxu0
  %v1620 = vmax.f32 %v1612, 0.0
  %v1621 = vmax.f32 %v1614, 0.0
  %v1622 = vmax.f32 %v1616, 0.0
  %v1623 = vmax.f32 %v1618, 0.0
  %v1624 = vpack.c.bf16 %v1622, %v1620
  %v1625 = vpack.c.bf16 %v1623, %v1621
  %v1626 = vld [vmem:[%s8] sm:$0xff]
  %v1627 = vld [vmem:[%s8 + $0x8] sm:$0xff]
  %v1628 = vld [vmem:[%s8 + $0x10] sm:$0xff]
  %v1629 = vld [vmem:[%s8 + $0x18] sm:$0xff]
  %v1630 = vld [vmem:[%s8 + $0x20] sm:$0xff]
  %v1631 = vld [vmem:[%s8 + $0x28] sm:$0xff]
  %v1632 = vld [vmem:[%s8 + $0x30] sm:$0xff]
  %v1633 = vld [vmem:[%s8 + $0x38] sm:$0xff]
  %v1634 = vld [vmem:[%s8 + $0x40] sm:$0xff]
  %v1635 = vld [vmem:[%s8 + $0x48] sm:$0xff]
  %v1636 = vld [vmem:[%s8 + $0x50] sm:$0xff]
  %v1637 = vld [vmem:[%s8 + $0x58] sm:$0xff]
  %v1638 = vld [vmem:[%s8 + $0x60] sm:$0xff]
  %v1639 = vld [vmem:[%s8 + $0x68] sm:$0xff]
  %v1640 = vld [vmem:[%s8 + $0x70] sm:$0xff]
  %v1641 = vld [vmem:[%s8 + $0x78] sm:$0xff]
  %v1642 = vld [vmem:[%s8 + $0x80] sm:$0xff]
  %v1643 = vld [vmem:[%s8 + $0x88] sm:$0xff]
  %v1644 = vld [vmem:[%s8 + $0x90] sm:$0xff]
  %v1645 = vld [vmem:[%s8 + $0x98] sm:$0xff]
  %v1646 = vld [vmem:[%s8 + $0xa0] sm:$0xff]
  %v1647 = vld [vmem:[%s8 + $0xa8] sm:$0xff]
  %v1648 = vld [vmem:[%s8 + $0xb0] sm:$0xff]
  %v1649 = vld [vmem:[%s8 + $0xb8] sm:$0xff]
  %v1650 = vld [vmem:[%s8 + $0xc0] sm:$0xff]
  %v1651 = vld [vmem:[%s8 + $0xc8] sm:$0xff]
  %v1652 = vld [vmem:[%s8 + $0xd0] sm:$0xff]
  %v1653 = vld [vmem:[%s8 + $0xd8] sm:$0xff]
  %v1654 = vld [vmem:[%s8 + $0xe0] sm:$0xff]
  %v1655 = vld [vmem:[%s8 + $0xe8] sm:$0xff]
  %v1656 = vld [vmem:[%s8 + $0xf0] sm:$0xff]
  %v1657 = vld [vmem:[%s8 + $0xf8] sm:$0xff]
  %s1658 = scalar_lea.vmem %s12, 6
  %v1659 = vld [vmem:[%s1658] ss:$8 sm:$0x3]
  %v1661 = vlaneseq
  %v1662 = vshrl.u32 %v1661, 7
  %v1663 = vsub.s32 0, %v1662
  %v1664 = vrot.slane %v1659, %v1663
  %v1665 = vlaneseq
  %v1666 = vshrl.u32 %v1665, 7
  %v1667 = vsub.s32 1, %v1666
  %v1668 = vrot.slane %v1659, %v1667
  %v1703 = vunpack.c.l.b16 %v1626
  %v1704 = vunpack.c.h.b16 %v1626
  %v1705 = vunpack.c.l.b16 %v1627
  %v1706 = vunpack.c.h.b16 %v1627
  %v1707 = vunpack.c.l.b16 %v1628
  %v1708 = vunpack.c.h.b16 %v1628
  %v1709 = vunpack.c.l.b16 %v1629
  %v1710 = vunpack.c.h.b16 %v1629
  %v1711 = vunpack.c.l.b16 %v1630
  %v1712 = vunpack.c.h.b16 %v1630
  %v1713 = vunpack.c.l.b16 %v1631
  %v1714 = vunpack.c.h.b16 %v1631
  %v1715 = vunpack.c.l.b16 %v1632
  %v1716 = vunpack.c.h.b16 %v1632
  %v1717 = vunpack.c.l.b16 %v1633
  %v1718 = vunpack.c.h.b16 %v1633
  %v1719 = vunpack.c.l.b16 %v1634
  %v1720 = vunpack.c.h.b16 %v1634
  %v1721 = vunpack.c.l.b16 %v1635
  %v1722 = vunpack.c.h.b16 %v1635
  %v1723 = vunpack.c.l.b16 %v1636
  %v1724 = vunpack.c.h.b16 %v1636
  %v1725 = vunpack.c.l.b16 %v1637
  %v1726 = vunpack.c.h.b16 %v1637
  %v1727 = vunpack.c.l.b16 %v1638
  %v1728 = vunpack.c.h.b16 %v1638
  %v1729 = vunpack.c.l.b16 %v1639
  %v1730 = vunpack.c.h.b16 %v1639
  %v1731 = vunpack.c.l.b16 %v1640
  %v1732 = vunpack.c.h.b16 %v1640
  %v1733 = vunpack.c.l.b16 %v1641
  %v1734 = vunpack.c.h.b16 %v1641
  %v1735 = vunpack.c.l.b16 %v1642
  %v1736 = vunpack.c.h.b16 %v1642
  %v1737 = vunpack.c.l.b16 %v1643
  %v1738 = vunpack.c.h.b16 %v1643
  %v1739 = vunpack.c.l.b16 %v1644
  %v1740 = vunpack.c.h.b16 %v1644
  %v1741 = vunpack.c.l.b16 %v1645
  %v1742 = vunpack.c.h.b16 %v1645
  %v1743 = vunpack.c.l.b16 %v1646
  %v1744 = vunpack.c.h.b16 %v1646
  %v1745 = vunpack.c.l.b16 %v1647
  %v1746 = vunpack.c.h.b16 %v1647
  %v1747 = vunpack.c.l.b16 %v1648
  %v1748 = vunpack.c.h.b16 %v1648
  %v1749 = vunpack.c.l.b16 %v1649
  %v1750 = vunpack.c.h.b16 %v1649
  %v1751 = vunpack.c.l.b16 %v1650
  %v1752 = vunpack.c.h.b16 %v1650
  %v1753 = vunpack.c.l.b16 %v1651
  %v1754 = vunpack.c.h.b16 %v1651
  %v1755 = vunpack.c.l.b16 %v1652
  %v1756 = vunpack.c.h.b16 %v1652
  %v1757 = vunpack.c.l.b16 %v1653
  %v1758 = vunpack.c.h.b16 %v1653
  %v1759 = vunpack.c.l.b16 %v1654
  %v1760 = vunpack.c.h.b16 %v1654
  %v1761 = vunpack.c.l.b16 %v1655
  %v1762 = vunpack.c.h.b16 %v1655
  %v1763 = vunpack.c.l.b16 %v1656
  %v1764 = vunpack.c.h.b16 %v1656
  %v1765 = vunpack.c.l.b16 %v1657
  %v1766 = vunpack.c.h.b16 %v1657
  %v1767 = vpack.c.b16 %v1705, %v1703
  %v1768 = vpack.c.b16 %v1706, %v1704
  %v1769 = vpack.c.b16 %v1709, %v1707
  %v1770 = vpack.c.b16 %v1710, %v1708
  %v1771 = vpack.c.b16 %v1713, %v1711
  %v1772 = vpack.c.b16 %v1714, %v1712
  %v1773 = vpack.c.b16 %v1717, %v1715
  %v1774 = vpack.c.b16 %v1718, %v1716
  %v1775 = vpack.c.b16 %v1721, %v1719
  %v1776 = vpack.c.b16 %v1722, %v1720
  %v1777 = vpack.c.b16 %v1725, %v1723
  %v1778 = vpack.c.b16 %v1726, %v1724
  %v1779 = vpack.c.b16 %v1729, %v1727
  %v1780 = vpack.c.b16 %v1730, %v1728
  %v1781 = vpack.c.b16 %v1733, %v1731
  %v1782 = vpack.c.b16 %v1734, %v1732
  %v1783 = vpack.c.b16 %v1737, %v1735
  %v1784 = vpack.c.b16 %v1738, %v1736
  %v1785 = vpack.c.b16 %v1741, %v1739
  %v1786 = vpack.c.b16 %v1742, %v1740
  %v1787 = vpack.c.b16 %v1745, %v1743
  %v1788 = vpack.c.b16 %v1746, %v1744
  %v1789 = vpack.c.b16 %v1749, %v1747
  %v1790 = vpack.c.b16 %v1750, %v1748
  %v1791 = vpack.c.b16 %v1753, %v1751
  %v1792 = vpack.c.b16 %v1754, %v1752
  %v1793 = vpack.c.b16 %v1757, %v1755
  %v1794 = vpack.c.b16 %v1758, %v1756
  %v1795 = vpack.c.b16 %v1761, %v1759
  %v1796 = vpack.c.b16 %v1762, %v1760
  %v1797 = vpack.c.b16 %v1765, %v1763
  %v1798 = vpack.c.b16 %v1766, %v1764
  %1831 = vmatprep.subr.bf16.mxu0 %v1768
  %1832 = vmatpush1.bf16.msra.mxu0 %v1767
  %1833 = vmatprep.subr.bf16.mxu0 %v1770
  %1834 = vmatpush1.bf16.msra.mxu0 %v1769
  %1835 = vmatprep.subr.bf16.mxu0 %v1772
  %1836 = vmatpush1.bf16.msra.mxu0 %v1771
  %1837 = vmatprep.subr.bf16.mxu0 %v1774
  %1838 = vmatpush1.bf16.msra.mxu0 %v1773
  %1839 = vmatprep.subr.bf16.mxu0 %v1776
  %1840 = vmatpush1.bf16.msra.mxu0 %v1775
  %1841 = vmatprep.subr.bf16.mxu0 %v1778
  %1842 = vmatpush1.bf16.msra.mxu0 %v1777
  %1843 = vmatprep.subr.bf16.mxu0 %v1780
  %1844 = vmatpush1.bf16.msra.mxu0 %v1779
  %1845 = vmatprep.subr.bf16.mxu0 %v1782
  %1846 = vmatpush1.bf16.msra.mxu0 %v1781
  %1847 = vmatprep.subr.bf16.mxu0 %v1784
  %1848 = vmatpush1.bf16.msra.mxu0 %v1783
  %1849 = vmatprep.subr.bf16.mxu0 %v1786
  %1850 = vmatpush1.bf16.msra.mxu0 %v1785
  %1851 = vmatprep.subr.bf16.mxu0 %v1788
  %1852 = vmatpush1.bf16.msra.mxu0 %v1787
  %1853 = vmatprep.subr.bf16.mxu0 %v1790
  %1854 = vmatpush1.bf16.msra.mxu0 %v1789
  %1855 = vmatprep.subr.bf16.mxu0 %v1792
  %1856 = vmatpush1.bf16.msra.mxu0 %v1791
  %1857 = vmatprep.subr.bf16.mxu0 %v1794
  %1858 = vmatpush1.bf16.msra.mxu0 %v1793
  %1859 = vmatprep.subr.bf16.mxu0 %v1796
  %1860 = vmatpush1.bf16.msra.mxu0 %v1795
  %1861 = vmatprep.subr.bf16.mxu0 %v1798
  %1862 = vmatpush1.bf16.msra.mxu0 %v1797
  %1863 = vmatprep.mubr.bf16.mxu0 %v1625
  %1864 = vmatmul.mubr.bf16.gmra.mrb[0].mxu0 %v1624
  %v1865 = vpop.f32.mrb[0].mxu0
  %v1866 = vadd.f32 %v1664, %v1865
  %v1867 = vpop.f32.mrb[0].mxu0
  %v1868 = vadd.f32 %v1668, %v1867
  %v1869 = vpop.f32.mrb[0].mxu0
  %v1870 = vadd.f32 %v1664, %v1869
  %v1871 = vpop.f32.mrb[0].mxu0
  %v1872 = vadd.f32 %v1668, %v1871
  %1873 = vdwg.mxu0
  %v1874 = vmax.f32 %v1866, 0.0
  %v1875 = vmax.f32 %v1868, 0.0
  %v1876 = vmax.f32 %v1870, 0.0
  %v1877 = vmax.f32 %v1872, 0.0
  %v1878 = vpack.c.bf16 %v1876, %v1874
  %v1879 = vpack.c.bf16 %v1877, %v1875
  %v1880 = vld [vmem:[%s9] sm:$0xff]
  %v1881 = vld [vmem:[%s9 + $0x8] sm:$0xff]
  %v1882 = vld [vmem:[%s9 + $0x10] sm:$0xff]
  %v1883 = vld [vmem:[%s9 + $0x18] sm:$0xff]
  %v1884 = vld [vmem:[%s9 + $0x20] sm:$0xff]
  %v1885 = vld [vmem:[%s9 + $0x28] sm:$0xff]
  %v1886 = vld [vmem:[%s9 + $0x30] sm:$0xff]
  %v1887 = vld [vmem:[%s9 + $0x38] sm:$0xff]
  %v1888 = vld [vmem:[%s9 + $0x40] sm:$0xff]
  %v1889 = vld [vmem:[%s9 + $0x48] sm:$0xff]
  %v1890 = vld [vmem:[%s9 + $0x50] sm:$0xff]
  %v1891 = vld [vmem:[%s9 + $0x58] sm:$0xff]
  %v1892 = vld [vmem:[%s9 + $0x60] sm:$0xff]
  %v1893 = vld [vmem:[%s9 + $0x68] sm:$0xff]
  %v1894 = vld [vmem:[%s9 + $0x70] sm:$0xff]
  %v1895 = vld [vmem:[%s9 + $0x78] sm:$0xff]
  %v1896 = vld [vmem:[%s9 + $0x80] sm:$0xff]
  %v1897 = vld [vmem:[%s9 + $0x88] sm:$0xff]
  %v1898 = vld [vmem:[%s9 + $0x90] sm:$0xff]
  %v1899 = vld [vmem:[%s9 + $0x98] sm:$0xff]
  %v1900 = vld [vmem:[%s9 + $0xa0] sm:$0xff]
  %v1901 = vld [vmem:[%s9 + $0xa8] sm:$0xff]
  %v1902 = vld [vmem:[%s9 + $0xb0] sm:$0xff]
  %v1903 = vld [vmem:[%s9 + $0xb8] sm:$0xff]
  %v1904 = vld [vmem:[%s9 + $0xc0] sm:$0xff]
  %v1905 = vld [vmem:[%s9 + $0xc8] sm:$0xff]
  %v1906 = vld [vmem:[%s9 + $0xd0] sm:$0xff]
  %v1907 = vld [vmem:[%s9 + $0xd8] sm:$0xff]
  %v1908 = vld [vmem:[%s9 + $0xe0] sm:$0xff]
  %v1909 = vld [vmem:[%s9 + $0xe8] sm:$0xff]
  %v1910 = vld [vmem:[%s9 + $0xf0] sm:$0xff]
  %v1911 = vld [vmem:[%s9 + $0xf8] sm:$0xff]
  %v1944 = vunpack.c.l.b16 %v1880
  %v1945 = vunpack.c.h.b16 %v1880
  %v1946 = vunpack.c.l.b16 %v1881
  %v1947 = vunpack.c.h.b16 %v1881
  %v1948 = vunpack.c.l.b16 %v1882
  %v1949 = vunpack.c.h.b16 %v1882
  %v1950 = vunpack.c.l.b16 %v1883
  %v1951 = vunpack.c.h.b16 %v1883
  %v1952 = vunpack.c.l.b16 %v1884
  %v1953 = vunpack.c.h.b16 %v1884
  %v1954 = vunpack.c.l.b16 %v1885
  %v1955 = vunpack.c.h.b16 %v1885
  %v1956 = vunpack.c.l.b16 %v1886
  %v1957 = vunpack.c.h.b16 %v1886
  %v1958 = vunpack.c.l.b16 %v1887
  %v1959 = vunpack.c.h.b16 %v1887
  %v1960 = vunpack.c.l.b16 %v1888
  %v1961 = vunpack.c.h.b16 %v1888
  %v1962 = vunpack.c.l.b16 %v1889
  %v1963 = vunpack.c.h.b16 %v1889
  %v1964 = vunpack.c.l.b16 %v1890
  %v1965 = vunpack.c.h.b16 %v1890
  %v1966 = vunpack.c.l.b16 %v1891
  %v1967 = vunpack.c.h.b16 %v1891
  %v1968 = vunpack.c.l.b16 %v1892
  %v1969 = vunpack.c.h.b16 %v1892
  %v1970 = vunpack.c.l.b16 %v1893
  %v1971 = vunpack.c.h.b16 %v1893
  %v1972 = vunpack.c.l.b16 %v1894
  %v1973 = vunpack.c.h.b16 %v1894
  %v1974 = vunpack.c.l.b16 %v1895
  %v1975 = vunpack.c.h.b16 %v1895
  %v1976 = vunpack.c.l.b16 %v1896
  %v1977 = vunpack.c.h.b16 %v1896
  %v1978 = vunpack.c.l.b16 %v1897
  %v1979 = vunpack.c.h.b16 %v1897
  %v1980 = vunpack.c.l.b16 %v1898
  %v1981 = vunpack.c.h.b16 %v1898
  %v1982 = vunpack.c.l.b16 %v1899
  %v1983 = vunpack.c.h.b16 %v1899
  %v1984 = vunpack.c.l.b16 %v1900
  %v1985 = vunpack.c.h.b16 %v1900
  %v1986 = vunpack.c.l.b16 %v1901
  %v1987 = vunpack.c.h.b16 %v1901
  %v1988 = vunpack.c.l.b16 %v1902
  %v1989 = vunpack.c.h.b16 %v1902
  %v1990 = vunpack.c.l.b16 %v1903
  %v1991 = vunpack.c.h.b16 %v1903
  %v1992 = vunpack.c.l.b16 %v1904
  %v1993 = vunpack.c.h.b16 %v1904
  %v1994 = vunpack.c.l.b16 %v1905
  %v1995 = vunpack.c.h.b16 %v1905
  %v1996 = vunpack.c.l.b16 %v1906
  %v1997 = vunpack.c.h.b16 %v1906
  %v1998 = vunpack.c.l.b16 %v1907
  %v1999 = vunpack.c.h.b16 %v1907
  %v2000 = vunpack.c.l.b16 %v1908
  %v2001 = vunpack.c.h.b16 %v1908
  %v2002 = vunpack.c.l.b16 %v1909
  %v2003 = vunpack.c.h.b16 %v1909
  %v2004 = vunpack.c.l.b16 %v1910
  %v2005 = vunpack.c.h.b16 %v1910
  %v2006 = vunpack.c.l.b16 %v1911
  %v2007 = vunpack.c.h.b16 %v1911
  %v2008 = vpack.c.b16 %v1946, %v1944
  %v2009 = vpack.c.b16 %v1947, %v1945
  %v2010 = vpack.c.b16 %v1950, %v1948
  %v2011 = vpack.c.b16 %v1951, %v1949
  %v2012 = vpack.c.b16 %v1954, %v1952
  %v2013 = vpack.c.b16 %v1955, %v1953
  %v2014 = vpack.c.b16 %v1958, %v1956
  %v2015 = vpack.c.b16 %v1959, %v1957
  %v2016 = vpack.c.b16 %v1962, %v1960
  %v2017 = vpack.c.b16 %v1963, %v1961
  %v2018 = vpack.c.b16 %v1966, %v1964
  %v2019 = vpack.c.b16 %v1967, %v1965
  %v2020 = vpack.c.b16 %v1970, %v1968
  %v2021 = vpack.c.b16 %v1971, %v1969
  %v2022 = vpack.c.b16 %v1974, %v1972
  %v2023 = vpack.c.b16 %v1975, %v1973
  %v2024 = vpack.c.b16 %v1978, %v1976
  %v2025 = vpack.c.b16 %v1979, %v1977
  %v2026 = vpack.c.b16 %v1982, %v1980
  %v2027 = vpack.c.b16 %v1983, %v1981
  %v2028 = vpack.c.b16 %v1986, %v1984
  %v2029 = vpack.c.b16 %v1987, %v1985
  %v2030 = vpack.c.b16 %v1990, %v1988
  %v2031 = vpack.c.b16 %v1991, %v1989
  %v2032 = vpack.c.b16 %v1994, %v1992
  %v2033 = vpack.c.b16 %v1995, %v1993
  %v2034 = vpack.c.b16 %v1998, %v1996
  %v2035 = vpack.c.b16 %v1999, %v1997
  %v2036 = vpack.c.b16 %v2002, %v2000
  %v2037 = vpack.c.b16 %v2003, %v2001
  %v2038 = vpack.c.b16 %v2006, %v2004
  %v2039 = vpack.c.b16 %v2007, %v2005
  %2072 = vmatprep.subr.bf16.mxu0 %v2009
  %2073 = vmatpush1.bf16.msra.mxu0 %v2008
  %2074 = vmatprep.subr.bf16.mxu0 %v2011
  %2075 = vmatpush1.bf16.msra.mxu0 %v2010
  %2076 = vmatprep.subr.bf16.mxu0 %v2013
  %2077 = vmatpush1.bf16.msra.mxu0 %v2012
  %2078 = vmatprep.subr.bf16.mxu0 %v2015
  %2079 = vmatpush1.bf16.msra.mxu0 %v2014
  %2080 = vmatprep.subr.bf16.mxu0 %v2017
  %2081 = vmatpush1.bf16.msra.mxu0 %v2016
  %2082 = vmatprep.subr.bf16.mxu0 %v2019
  %2083 = vmatpush1.bf16.msra.mxu0 %v2018
  %2084 = vmatprep.subr.bf16.mxu0 %v2021
  %2085 = vmatpush1.bf16.msra.mxu0 %v2020
  %2086 = vmatprep.subr.bf16.mxu0 %v2023
  %2087 = vmatpush1.bf16.msra.mxu0 %v2022
  %2088 = vmatprep.subr.bf16.mxu0 %v2025
  %2089 = vmatpush1.bf16.msra.mxu0 %v2024
  %2090 = vmatprep.subr.bf16.mxu0 %v2027
  %2091 = vmatpush1.bf16.msra.mxu0 %v2026
  %2092 = vmatprep.subr.bf16.mxu0 %v2029
  %2093 = vmatpush1.bf16.msra.mxu0 %v2028
  %2094 = vmatprep.subr.bf16.mxu0 %v2031
  %2095 = vmatpush1.bf16.msra.mxu0 %v2030
  %2096 = vmatprep.subr.bf16.mxu0 %v2033
  %2097 = vmatpush1.bf16.msra.mxu0 %v2032
  %2098 = vmatprep.subr.bf16.mxu0 %v2035
  %2099 = vmatpush1.bf16.msra.mxu0 %v2034
  %2100 = vmatprep.subr.bf16.mxu0 %v2037
  %2101 = vmatpush1.bf16.msra.mxu0 %v2036
  %2102 = vmatprep.subr.bf16.mxu0 %v2039
  %2103 = vmatpush1.bf16.msra.mxu0 %v2038
  %2104 = vmatprep.mubr.bf16.mxu0 %v1879
  %2105 = vmatmul.mubr.bf16.gmra.mrb[0].mxu0 %v1878
  %v2106 = vpop.f32.mrb[0].mxu0
  %v2107 = vadd.f32 0.0, %v2106
  %v2108 = vpop.f32.mrb[0].mxu0
  %v2109 = vadd.f32 0.0, %v2108
  %v2110 = vpop.f32.mrb[0].mxu0
  %v2111 = vadd.f32 0.0, %v2110
  %v2112 = vpop.f32.mrb[0].mxu0
  %v2113 = vadd.f32 0.0, %v2112
  %2114 = vdwg.mxu0
  %v2115 = vmax.bf16 %v48, 0
  %v2116 = vmax.bf16 %v49, 0
  %v2117 = vld [vmem:[%s10] sm:$0xf]
  %v2118 = vld [vmem:[%s10 + $0x4] sm:$0xf]
  %v2119 = vld [vmem:[%s10 + $0x8] sm:$0xf]
  %v2120 = vld [vmem:[%s10 + $0xc] sm:$0xf]
  %v2121 = vld [vmem:[%s10 + $0x10] sm:$0xf]
  %v2122 = vld [vmem:[%s10 + $0x14] sm:$0xf]
  %v2123 = vld [vmem:[%s10 + $0x18] sm:$0xf]
  %v2124 = vld [vmem:[%s10 + $0x1c] sm:$0xf]
  %v2125 = vld [vmem:[%s10 + $0x20] sm:$0xf]
  %v2126 = vld [vmem:[%s10 + $0x24] sm:$0xf]
  %v2127 = vld [vmem:[%s10 + $0x28] sm:$0xf]
  %v2128 = vld [vmem:[%s10 + $0x2c] sm:$0xf]
  %v2129 = vld [vmem:[%s10 + $0x30] sm:$0xf]
  %v2130 = vld [vmem:[%s10 + $0x34] sm:$0xf]
  %v2131 = vld [vmem:[%s10 + $0x38] sm:$0xf]
  %v2132 = vld [vmem:[%s10 + $0x3c] sm:$0xf]
  %v2135 = vunpack.c.l.b16 %v2115
  %v2136 = vunpack.c.l.b16 %v2116
  %v2137 = vpack.c.b16 %v2136, %v2135
  %v2155 = vunpack.c.l.b16 %v2117
  %v2156 = vunpack.c.l.b16 %v2118
  %v2157 = vunpack.c.l.b16 %v2119
  %v2158 = vunpack.c.l.b16 %v2120
  %v2159 = vunpack.c.l.b16 %v2121
  %v2160 = vunpack.c.l.b16 %v2122
  %v2161 = vunpack.c.l.b16 %v2123
  %v2162 = vunpack.c.l.b16 %v2124
  %v2163 = vunpack.c.l.b16 %v2125
  %v2164 = vunpack.c.l.b16 %v2126
  %v2165 = vunpack.c.l.b16 %v2127
  %v2166 = vunpack.c.l.b16 %v2128
  %v2167 = vunpack.c.l.b16 %v2129
  %v2168 = vunpack.c.l.b16 %v2130
  %v2169 = vunpack.c.l.b16 %v2131
  %v2170 = vunpack.c.l.b16 %v2132
  %v2171 = vpack.c.b16 %v2156, %v2155
  %v2172 = vpack.c.b16 %v2158, %v2157
  %v2173 = vpack.c.b16 %v2160, %v2159
  %v2174 = vpack.c.b16 %v2162, %v2161
  %v2175 = vpack.c.b16 %v2164, %v2163
  %v2176 = vpack.c.b16 %v2166, %v2165
  %v2177 = vpack.c.b16 %v2168, %v2167
  %v2178 = vpack.c.b16 %v2170, %v2169
  %2187 = vmatprep.subr.bf16.mxu0 0
  %2188 = vmatpush1.bf16.msra.mxu0 %v2171
  %2189 = vmatprep.subr.bf16.mxu0 0
  %2190 = vmatpush1.bf16.msra.mxu0 %v2172
  %2191 = vmatprep.subr.bf16.mxu0 0
  %2192 = vmatpush1.bf16.msra.mxu0 %v2173
  %2193 = vmatprep.subr.bf16.mxu0 0
  %2194 = vmatpush1.bf16.msra.mxu0 %v2174
  %2195 = vmatprep.subr.bf16.mxu0 0
  %2196 = vmatpush1.bf16.msra.mxu0 %v2175
  %2197 = vmatprep.subr.bf16.mxu0 0
  %2198 = vmatpush1.bf16.msra.mxu0 %v2176
  %2199 = vmatprep.subr.bf16.mxu0 0
  %2200 = vmatpush1.bf16.msra.mxu0 %v2177
  %2201 = vmatprep.subr.bf16.mxu0 0
  %2202 = vmatpush1.bf16.msra.mxu0 %v2178
  %2203 = vmatprep.subr.bf16.mxu0 0
  %2204 = vmatpush1.bf16.msra.mxu0 0
  %2205 = vmatprep.subr.bf16.mxu0 0
  %2206 = vmatpush1.bf16.msra.mxu0 0
  %2207 = vmatprep.subr.bf16.mxu0 0
  %2208 = vmatpush1.bf16.msra.mxu0 0
  %2209 = vmatprep.subr.bf16.mxu0 0
  %2210 = vmatpush1.bf16.msra.mxu0 0
  %2211 = vmatprep.subr.bf16.mxu0 0
  %2212 = vmatpush1.bf16.msra.mxu0 0
  %2213 = vmatprep.subr.bf16.mxu0 0
  %2214 = vmatpush1.bf16.msra.mxu0 0
  %2215 = vmatprep.subr.bf16.mxu0 0
  %2216 = vmatpush1.bf16.msra.mxu0 0
  %2217 = vmatprep.subr.bf16.mxu0 0
  %2218 = vmatpush1.bf16.msra.mxu0 0
  %2219 = vmatprep.mubr.bf16.mxu0 0
  %2220 = vmatmul.mubr.bf16.gmra.mrb[0].mxu0 %v2137
  %v2221 = vpop.f32.mrb[0].mxu0
  %v2222 = vadd.f32 0.0, %v2221
  %v2223 = vpop.f32.mrb[0].mxu0
  %v2224 = vpop.f32.mrb[0].mxu0
  %v2225 = vadd.f32 0.0, %v2224
  %v2226 = vpop.f32.mrb[0].mxu0
  %2227 = vdwg.mxu0
  %v2228 = vadd.f32 %v2107, %v2222
  %v2229 = vadd.f32 %v2111, %v2225
  %v2230 = vld [vmem:[%s13] sm:$0x1]
  %v2231 = vlaneseq
  %v2232 = vshrl.u32 %v2231, 7
  %v2233 = vsub.s32 0, %v2232
  %v2234 = vrot.slane %v2230, %v2233
  %v2235 = vadd.f32 %v2228, %v2234
  %v2236 = vadd.f32 %v2229, %v2234
  %v2237 = vmax.f32 %v2235, 0.0
  %v2238 = vmax.f32 %v2236, 0.0
  %v2239 = vpack.c.bf16 %v2238, %v2237
  %v2240 = vld [vmem:[%s11] sm:$0xf]
  %v2241 = vld [vmem:[%s11 + $0x4] sm:$0xf]
  %v2242 = vld [vmem:[%s11 + $0x8] sm:$0xf]
  %v2243 = vld [vmem:[%s11 + $0xc] sm:$0xf]
  %v2244 = vld [vmem:[%s11 + $0x10] sm:$0xf]
  %v2245 = vld [vmem:[%s11 + $0x14] sm:$0xf]
  %v2246 = vld [vmem:[%s11 + $0x18] sm:$0xf]
  %v2247 = vld [vmem:[%s11 + $0x1c] sm:$0xf]
  %v2248 = vld [vmem:[%s11 + $0x20] sm:$0xf]
  %v2249 = vld [vmem:[%s11 + $0x24] sm:$0xf]
  %v2250 = vld [vmem:[%s11 + $0x28] sm:$0xf]
  %v2251 = vld [vmem:[%s11 + $0x2c] sm:$0xf]
  %v2252 = vld [vmem:[%s11 + $0x30] sm:$0xf]
  %v2253 = vld [vmem:[%s11 + $0x34] sm:$0xf]
  %v2254 = vld [vmem:[%s11 + $0x38] sm:$0xf]
  %v2255 = vld [vmem:[%s11 + $0x3c] sm:$0xf]
  %v2272 = vunpack.c.l.b16 %v2240
  %v2273 = vunpack.c.l.b16 %v2241
  %v2274 = vunpack.c.l.b16 %v2242
  %v2275 = vunpack.c.l.b16 %v2243
  %v2276 = vunpack.c.l.b16 %v2244
  %v2277 = vunpack.c.l.b16 %v2245
  %v2278 = vunpack.c.l.b16 %v2246
  %v2279 = vunpack.c.l.b16 %v2247
  %v2280 = vunpack.c.l.b16 %v2248
  %v2281 = vunpack.c.l.b16 %v2249
  %v2282 = vunpack.c.l.b16 %v2250
  %v2283 = vunpack.c.l.b16 %v2251
  %v2284 = vunpack.c.l.b16 %v2252
  %v2285 = vunpack.c.l.b16 %v2253
  %v2286 = vunpack.c.l.b16 %v2254
  %v2287 = vunpack.c.l.b16 %v2255
  %v2288 = vpack.c.b16 %v2273, %v2272
  %v2289 = vpack.c.b16 %v2275, %v2274
  %v2290 = vpack.c.b16 %v2277, %v2276
  %v2291 = vpack.c.b16 %v2279, %v2278
  %v2292 = vpack.c.b16 %v2281, %v2280
  %v2293 = vpack.c.b16 %v2283, %v2282
  %v2294 = vpack.c.b16 %v2285, %v2284
  %v2295 = vpack.c.b16 %v2287, %v2286
  %2304 = vmatprep.subr.bf16.mxu0 0
  %2305 = vmatpush1.bf16.msra.mxu0 %v2288
  %2306 = vmatprep.subr.bf16.mxu0 0
  %2307 = vmatpush1.bf16.msra.mxu0 %v2289
  %2308 = vmatprep.subr.bf16.mxu0 0
  %2309 = vmatpush1.bf16.msra.mxu0 %v2290
  %2310 = vmatprep.subr.bf16.mxu0 0
  %2311 = vmatpush1.bf16.msra.mxu0 %v2291
  %2312 = vmatprep.subr.bf16.mxu0 0
  %2313 = vmatpush1.bf16.msra.mxu0 %v2292
  %2314 = vmatprep.subr.bf16.mxu0 0
  %2315 = vmatpush1.bf16.msra.mxu0 %v2293
  %2316 = vmatprep.subr.bf16.mxu0 0
  %2317 = vmatpush1.bf16.msra.mxu0 %v2294
  %2318 = vmatprep.subr.bf16.mxu0 0
  %2319 = vmatpush1.bf16.msra.mxu0 %v2295
  %2320 = vmatprep.subr.bf16.mxu0 0
  %2321 = vmatpush1.bf16.msra.mxu0 0
  %2322 = vmatprep.subr.bf16.mxu0 0
  %2323 = vmatpush1.bf16.msra.mxu0 0
  %2324 = vmatprep.subr.bf16.mxu0 0
  %2325 = vmatpush1.bf16.msra.mxu0 0
  %2326 = vmatprep.subr.bf16.mxu0 0
  %2327 = vmatpush1.bf16.msra.mxu0 0
  %2328 = vmatprep.subr.bf16.mxu0 0
  %2329 = vmatpush1.bf16.msra.mxu0 0
  %2330 = vmatprep.subr.bf16.mxu0 0
  %2331 = vmatpush1.bf16.msra.mxu0 0
  %2332 = vmatprep.subr.bf16.mxu0 0
  %2333 = vmatpush1.bf16.msra.mxu0 0
  %2334 = vmatprep.subr.bf16.mxu0 0
  %2335 = vmatpush1.bf16.msra.mxu0 0
  %2336 = vmatprep.mubr.bf16.mxu0 0
  %2337 = vmatmul.mubr.bf16.gmra.mrb[0].mxu0 %v2239
  %v2338 = vpop.f32.mrb[0].mxu0
  %v2339 = vadd.f32 0.0, %v2338
  %v2340 = vpop.f32.mrb[0].mxu0
  %v2341 = vpop.f32.mrb[0].mxu0
  %v2342 = vadd.f32 0.0, %v2341
  %v2343 = vpop.f32.mrb[0].mxu0
  %2344 = vdwg.mxu0
  %v2345 = vadd.f32 %v2109, %v2339
  %v2346 = vadd.f32 %v2113, %v2342
  %v2347 = vld [vmem:[%s13 + $0x1] sm:$0x1]
  %v2348 = vlaneseq
  %v2349 = vshrl.u32 %v2348, 7
  %v2350 = vsub.s32 0, %v2349
  %v2351 = vrot.slane %v2347, %v2350
  %v2352 = vadd.f32 %v2345, %v2351
  %v2353 = vadd.f32 %v2346, %v2351
  %v2354 = vpack.c.bf16 %v2353, %v2352
  %v2356 = vunpack.c.l.b16 %v2354
  %v2357 = vunpack.c.h.b16 %v2354
  %v2358 = vpack.c.b16 %v2356, %v2356
  %v2359 = vpack.c.b16 %v2357, %v2357
  %2362 = vst [vmem:[%s14] sm:$0xf] %v2358
  %2363 = vst [vmem:[%s14 + $0x4] sm:$0xf] %v2359
  // Predicated region
  $region58: #{_spacenet_forward_impl.1} parent=0 // pred_check
    _
  $region59: #{_spacenet_forward_impl.1} parent=0 // pred_check_branch
    %2365 = sbr.rel (0) target = $region61
  $region60: #{_spacenet_forward_impl.1} parent=0 // pred_region
    _
  $region61: #{_spacenet_forward_impl.1} parent=0 // pred_fallthru
    _
  // Predicated region
  $region62: #{_spacenet_forward_impl.1} parent=0 // pred_check
    _
  $region63: #{_spacenet_forward_impl.1} parent=0 // pred_check_branch
    %2367 = sbr.rel (0) target = $region65
  $region64: #{_spacenet_forward_impl.1} parent=0 // pred_region
    _
  $region65: #{_spacenet_forward_impl.1} parent=0 // pred_fallthru
    _

</llo_original>
